<compile_context>
chip_gen: v7x
topology: tpu7x:2x2x1
jax: 0.10.0
libtpu: 0.0.40
codegen_flags: <defaults>
</compile_context>

<pallas_src>
import functools

import jax
import jax.numpy as jnp
from jax.experimental import pallas as pl
from jax.experimental.pallas import tpu as pltpu

LANE = 128
_TD_MAX = 1024                    # dst-node tile upper bound
_TS_MAX = 2048                    # src-node tile upper bound (<= 2 MiB int8 A tile)
_VMEM_LIMIT = 48 * 1024 * 1024    # safe ceiling on v5e/v6e/v7x; usage is ~8 MiB


def _round_up(x, m):
    return (x + m - 1) // m * m


def _pick_tile(n_pad, max_tile, *, want_two_blocks):
    """Largest multiple of LANE that divides n_pad and is <= max_tile.

    If want_two_blocks, also cap at n_pad//2 so the grid axis has >= 2 blocks
    (lets v7x megacore shard the "parallel" dst axis across both TensorCores).
    """
    limit = min(max_tile, n_pad)
    if want_two_blocks and n_pad >= 2 * LANE:
        limit = min(limit, n_pad // 2)
    best = LANE
    t = LANE
    while t <= limit:
        if n_pad % t == 0:
            best = t
        t += LANE
    return best


# --------------------------------------------------------------------------
# Kernel: one 'mean' SAGEConv layer, tiled over (dst nodes, src nodes)
# --------------------------------------------------------------------------
def _sage_layer_kernel(a_ref, xs_ref, xd_ref, ws_ref, wn_ref, b_ref,
                       o_ref, acc_ref, *, ones_col, apply_relu):
    """grid = (n_pad//td, n_pad//ts); axis 0 = dst tiles ("parallel"),
    axis 1 = src tiles (reduction, "arbitrary").

      a_ref  : [td, ts]        int8   adjacency tile, A[i, j] = 1 iff edge j -> i
      xs_ref : [ts, Fin_p]     bf16   src features (col `ones_col` is all-ones)
      xd_ref : [td, Fin_p]     bf16   dst features (self path)
      ws_ref : [Fin_p, Fout_p] bf16   W_self  (zero-padded)
      wn_ref : [Fin_p, Fout_p] bf16   W_neigh (zero-padded)
      b_ref  : [1, Fout_p]     f32
      o_ref  : [td, Fout_p]    bf16/f32
      acc_ref: [td, Fin_p]     f32    scratch accumulator for A @ X
    """
    k = pl.program_id(1)

    @pl.when(k == 0)
    def _():
        acc_ref[...] = jnp.zeros_like(acc_ref)

    # int8 adjacency -> bf16 just-in-time (exact for 0/1); f32 MXU accumulation.
    a = a_ref[...].astype(jnp.bfloat16)
    acc_ref[...] += jnp.dot(a, xs_ref[...], preferred_element_type=jnp.float32)

    @pl.when(k == pl.num_programs(1) - 1)
    def _():
        acc = acc_ref[...]
        # xs carries an all-ones column at `ones_col`, so the in-degree fell out
        # of the A@X accumulation for free (no separate row-reduction over A).
        deg = acc[:, ones_col:ones_col + 1]
        inv = 1.0 / jnp.maximum(deg, 1.0)
        neigh = (acc * inv).astype(jnp.bfloat16)              # mean aggregation
        out = (jnp.dot(xd_ref[...], ws_ref[...], preferred_element_type=jnp.float32)
               + jnp.dot(neigh, wn_ref[...], preferred_element_type=jnp.float32)
               + b_ref[...])
        if apply_relu:
            out = jnp.maximum(out, 0.0)
        o_ref[...] = out.astype(o_ref.dtype)


# --------------------------------------------------------------------------
# pallas_call wrapper for one layer
# --------------------------------------------------------------------------
def _sage_conv(a, x, ws, wn, b, *, ones_col, apply_relu, td, ts, out_dtype):
    n_pad = a.shape[0]
    f_in_p = x.shape[1]
    f_out_p = ws.shape[1]
    grid = (n_pad // td, n_pad // ts)
    kernel = functools.partial(_sage_layer_kernel,
                               ones_col=ones_col, apply_relu=apply_relu)
    return pl.pallas_call(
        kernel,
        out_shape=jax.ShapeDtypeStruct((n_pad, f_out_p), out_dtype),
        grid_spec=pltpu.PrefetchScalarGridSpec(
            num_scalar_prefetch=0,
            grid=grid,
            in_specs=[
                pl.BlockSpec((td, ts), lambda i, k: (i, k)),          # A tile (int8)
                pl.BlockSpec((ts, f_in_p), lambda i, k: (k, 0)),      # X (src rows)
                pl.BlockSpec((td, f_in_p), lambda i, k: (i, 0)),      # X (dst rows)
                pl.BlockSpec((f_in_p, f_out_p), lambda i, k: (0, 0)), # W_self
                pl.BlockSpec((f_in_p, f_out_p), lambda i, k: (0, 0)), # W_neigh
                pl.BlockSpec((1, f_out_p), lambda i, k: (0, 0)),      # bias
            ],
            out_specs=pl.BlockSpec((td, f_out_p), lambda i, k: (i, 0)),
            scratch_shapes=[pltpu.VMEM((td, f_in_p), jnp.float32)],
        ),
        compiler_params=pltpu.CompilerParams(
            dimension_semantics=("parallel", "arbitrary"),
            vmem_limit_bytes=_VMEM_LIMIT,
        ),
    )(a, x, x, ws, wn, b)


# --------------------------------------------------------------------------
# Parameter packing & forward
# --------------------------------------------------------------------------
def _pad_weight(w, rows, cols):
    out = jnp.zeros((rows, cols), jnp.float32)
    out = out.at[:w.shape[0], :w.shape[1]].set(w)
    return out.astype(jnp.bfloat16)


def graphsage_forward(adj, x, params, *, td_max=_TD_MAX, ts_max=_TS_MAX):
    """h = relu(SAGEConv1(g, x)); h = SAGEConv2(g, h)   ('mean' aggregator).

    adj: [N, N] binary adjacency with adj[i, j] = 1 iff edge j -> i (any dtype;
         int8 avoids any wrapper pass over A).   x: [N, in_feats].
    """
    n = adj.shape[0]
    in_feats = x.shape[1]
    h_feats = params["w_self1"].shape[1]

    # Input-side feature widths stay narrow (+1 for the ones/degree column);
    # output-side widths are 128-lane dense for unmasked stores.
    f1p = _round_up(in_feats + 1, 32)     # layer-1 input width (ones col at in_feats)
    f2p = _round_up(h_feats + 1, LANE)    # layer-1 output width (ones col at h_feats)
    fo2 = _round_up(h_feats, LANE)        # final output width

    n_pad = _round_up(n, LANE)
    td = _pick_tile(n_pad, td_max, want_two_blocks=True)
    ts = _pick_tile(n_pad, ts_max, want_two_blocks=False)

    # Adjacency stays int8 in HBM; cast to bf16 happens inside the kernel.
    # TODO(synk): fp8(e4m3) adjacency for v7x's fp8 MXU path.
    a = adj if adj.dtype == jnp.int8 else adj.astype(jnp.int8)
    if n_pad != n:
        a = jnp.pad(a, ((0, n_pad - n), (0, n_pad - n)))

    # X is tiny: pad and append the all-ones column (in-degree falls out of A@X).
    xp = jnp.zeros((n_pad, f1p), jnp.bfloat16)
    xp = xp.at[:n, :in_feats].set(x.astype(jnp.bfloat16))
    xp = xp.at[:, in_feats].set(1.0)

    ws1 = _pad_weight(params["w_self1"], f1p, f2p)
    wn1 = _pad_weight(params["w_neigh1"], f1p, f2p)
    # Bias carries a 1.0 at column h_feats so the layer-1 output keeps an all-ones
    # column (ReLU(1) == 1) that layer 2 uses to recover the in-degree.
    b1 = jnp.zeros((1, f2p), jnp.float32)
    b1 = b1.at[0, :h_feats].set(params["b1"]).at[0, h_feats].set(1.0)

    ws2 = _pad_weight(params["w_self2"], f2p, fo2)
    wn2 = _pad_weight(params["w_neigh2"], f2p, fo2)
    b2 = jnp.zeros((1, fo2), jnp.float32).at[0, :h_feats].set(params["b2"])

    # Layer 1: bf16 output written directly (half the h store, no wrapper cast).
    h = _sage_conv(a, xp, ws1, wn1, b1, ones_col=in_feats, apply_relu=True,
                   td=td, ts=ts, out_dtype=jnp.bfloat16)
    # TODO(synk): train-time dropout(p=0.2) would mask h here; module default is
    #             dropout=False and eval-mode dropout is identity.
    out = _sage_conv(a, h, ws2, wn2, b2, ones_col=h_feats, apply_relu=False,
                     td=td, ts=ts, out_dtype=jnp.float32)
    return out[:n, :h_feats]


def graphsage_reference(adj, x, params):
    """Pure-JAX reference mirroring the kernel's bf16-operand / f32-accumulate math."""
    a = adj.astype(jnp.float32)

    def layer(h, ws, wn, b, relu):
        deg = jnp.sum(a, axis=1, keepdims=True)
        inv = 1.0 / jnp.maximum(deg, 1.0)
        ab, hb = a.astype(jnp.bfloat16), h.astype(jnp.bfloat16)
        neigh = jnp.dot(ab, hb, preferred_element_type=jnp.float32) * inv
        out = (jnp.dot(hb, ws.astype(jnp.bfloat16),
                       preferred_element_type=jnp.float32)
               + jnp.dot(neigh.astype(jnp.bfloat16), wn.astype(jnp.bfloat16),
                         preferred_element_type=jnp.float32)
               + b.reshape(1, -1))
        return jnp.maximum(out, 0.0) if relu else out

    h = layer(x.astype(jnp.float32),
              params["w_self1"], params["w_neigh1"], params["b1"], True)
    return layer(h, params["w_self2"], params["w_neigh2"], params["b2"], False)


def init_params(key, in_feats, h_feats):
    ks = jax.random.split(key, 6)
    s1 = (6.0 / (in_feats + h_feats)) ** 0.5   # xavier_uniform-like
    s2 = (6.0 / (h_feats + h_feats)) ** 0.5
    return {
        "w_self1":  jax.random.uniform(ks[0], (in_feats, h_feats), jnp.float32, -s1, s1),
        "w_neigh1": jax.random.uniform(ks[1], (in_feats, h_feats), jnp.float32, -s1, s1),
        "b1":       jax.random.uniform(ks[2], (h_feats,), jnp.float32, -0.1, 0.1),
        "w_self2":  jax.random.uniform(ks[3], (h_feats, h_feats), jnp.float32, -s2, s2),
        "w_neigh2": jax.random.uniform(ks[4], (h_feats, h_feats), jnp.float32, -s2, s2),
        "b2":       jax.random.uniform(ks[5], (h_feats,), jnp.float32, -0.1, 0.1),
    }


if __name__ == "__main__":
    key = jax.random.PRNGKey(0)
    k_g1, k_f1, k_param, k_g2, k_f2 = jax.random.split(key, 5)

    in_feats, h_feats = 16, 32
    params = init_params(k_param, in_feats, h_feats)

    fwd = jax.jit(graphsage_forward)
    fwd_small_tiles = jax.jit(
        functools.partial(graphsage_forward, td_max=256, ts_max=512))
    ref = jax.jit(graphsage_reference)

    # --- small graph: padded to one (128,128) tile, grid (1,1) ---
    n_small = 64
    adj_s = (jax.random.uniform(k_g1, (n_small, n_small)) < 0.1).astype(jnp.int8)
    x_s = jax.random.normal(k_f1, (n_small, in_feats), dtype=jnp.float32)
    out_s = fwd(adj_s, x_s, params)
    jax.block_until_ready(out_s)
    assert out_s.shape == (n_small, h_feats)
    assert bool(jnp.all(jnp.isfinite(out_s)))
    err_s = float(jnp.max(jnp.abs(out_s - ref(adj_s, x_s, params))))
    assert err_s < 5e-2, f"small-graph mismatch: {err_s}"

    # --- larger graph, default tiles: grid (2,1), parallel dst axis, no A pad/cast ---
    n_big = 1024
    adj_b = (jax.random.uniform(k_g2, (n_big, n_big)) < 0.05).astype(jnp.int8)
    x_b = jax.random.normal(k_f2, (n_big, in_feats), dtype=jnp.float32)
    out_b = fwd(adj_b, x_b, params)
    jax.block_until_ready(out_b)
    assert out_b.shape == (n_big, h_feats)
    assert bool(jnp.all(jnp.isfinite(out_b)))
    ref_b = ref(adj_b, x_b, params)
    err_b = float(jnp.max(jnp.abs(out_b - ref_b)))
    assert err_b < 5e-2, f"big-graph mismatch: {err_b}"

    # --- forced small tiles: grid (4,2), exercises the multi-step src reduction ---
    out_t = fwd_small_tiles(adj_b, x_b, params)
    jax.block_until_ready(out_t)
    err_t = float(jnp.max(jnp.abs(out_t - ref_b)))
    assert err_t < 5e-2, f"tiled-reduction mismatch: {err_t}"

    print("KERNEL_OK")
</pallas_src>

<mosaic_0001>
module attributes {stable_mosaic.version = 11 : i64} {
  func.func @_sage_layer_kernel(%arg0: i32, %arg1: i32, %arg2: memref<128x128xi8, #tpu.memory_space<vmem>>, %arg3: memref<128x32xbf16, #tpu.memory_space<vmem>>, %arg4: memref<128x32xbf16, #tpu.memory_space<vmem>>, %arg5: memref<32x128xbf16, #tpu.memory_space<vmem>>, %arg6: memref<32x128xbf16, #tpu.memory_space<vmem>>, %arg7: memref<1x128xf32, #tpu.memory_space<vmem>>, %arg8: memref<128x128xbf16, #tpu.memory_space<vmem>>, %arg9: memref<128x32xf32, #tpu.memory_space<vmem>>) attributes {dimension_semantics = [#tpu.dimension_semantics<parallel>, #tpu.dimension_semantics<arbitrary>], iteration_bounds = array<i64: 1, 1>, scalar_prefetch = 0 : i64, scratch_operands = 1 : i64, tpu.core_type = #tpu.core_type<tc>, window_params = [{transform_indices = @transform_0, window_bounds = array<i64: 128, 128>}, {transform_indices = @transform_1, window_bounds = array<i64: 128, 32>}, {transform_indices = @transform_2, window_bounds = array<i64: 128, 32>}, {pipeline_mode = #tpu.pipeline_mode<synchronous>, transform_indices = @transform_3, window_bounds = array<i64: 32, 128>}, {pipeline_mode = #tpu.pipeline_mode<synchronous>, transform_indices = @transform_4, window_bounds = array<i64: 32, 128>}, {pipeline_mode = #tpu.pipeline_mode<synchronous>, transform_indices = @transform_5, window_bounds = array<i64: 1, 128>}, {transform_indices = @transform_6, window_bounds = array<i64: 128, 128>}]} {
    %c0_i32 = arith.constant 0 : i32
    %0 = arith.cmpi eq, %arg1, %c0_i32 : i32
    %1 = arith.extui %0 : i1 to i32
    %c0_i32_0 = arith.constant 0 : i32
    %2 = arith.cmpi ne, %1, %c0_i32_0 : i32
    scf.if %2 {
      %cst_10 = arith.constant 0.000000e+00 : f32
      %13 = vector.broadcast %cst_10 : f32 to vector<128x32xf32>
      %c0_11 = arith.constant 0 : index
      %c0_12 = arith.constant 0 : index
      %14 = vector.load %arg9[%c0_11, %c0_12] : memref<128x32xf32, #tpu.memory_space<vmem>>, vector<128x32xf32>
      tpu.vector_store %arg9[%c0_11, %c0_12], %13 {strides = array<i32>} : memref<128x32xf32, #tpu.memory_space<vmem>>, vector<128x32xf32>,
    } else {
    }
    %c0 = arith.constant 0 : index
    %c0_1 = arith.constant 0 : index
    %3 = vector.load %arg2[%c0, %c0_1] : memref<128x128xi8, #tpu.memory_space<vmem>>, vector<128x128xi8>
    %4 = arith.sitofp %3 : vector<128x128xi8> to vector<128x128xbf16>
    %c0_2 = arith.constant 0 : index
    %c0_3 = arith.constant 0 : index
    %5 = vector.load %arg9[%c0_2, %c0_3] : memref<128x32xf32, #tpu.memory_space<vmem>>, vector<128x32xf32>
    %c0_4 = arith.constant 0 : index
    %c0_5 = arith.constant 0 : index
    %6 = vector.load %arg3[%c0_4, %c0_5] : memref<128x32xbf16, #tpu.memory_space<vmem>>, vector<128x32xbf16>
    %cst = arith.constant dense<0.000000e+00> : vector<128x32xf32>
    %7 = tpu.matmul %4, %6, %cst {dimension_numbers = #tpu.dot_dimension_numbers<[1], [0], [0], [1], [0, 0, 1, 1], [], []>} : vector<128x128xbf16>, vector<128x32xbf16>, vector<128x32xf32> -> vector<128x32xf32>
    %8 = arith.addf %5, %7 : vector<128x32xf32>
    %c0_6 = arith.constant 0 : index
    %c0_7 = arith.constant 0 : index
    %9 = vector.load %arg9[%c0_6, %c0_7] : memref<128x32xf32, #tpu.memory_space<vmem>>, vector<128x32xf32>
    tpu.vector_store %arg9[%c0_6, %c0_7], %8 {strides = array<i32>} : memref<128x32xf32, #tpu.memory_space<vmem>>, vector<128x32xf32>,
    %c0_i32_8 = arith.constant 0 : i32
    %10 = arith.cmpi eq, %arg1, %c0_i32_8 : i32
    %11 = arith.extui %10 : i1 to i32
    %c0_i32_9 = arith.constant 0 : i32
    %12 = arith.cmpi ne, %11, %c0_i32_9 : i32
    scf.if %12 {
      %c0_10 = arith.constant 0 : index
      %c0_11 = arith.constant 0 : index
      %13 = vector.load %arg9[%c0_10, %c0_11] : memref<128x32xf32, #tpu.memory_space<vmem>>, vector<128x32xf32>
      %14 = vector.extract_strided_slice %13 {offsets = [0, 16], sizes = [128, 1], strides = [1, 1]} : vector<128x32xf32> to vector<128x1xf32>
      %cst_12 = arith.constant 1.000000e+00 : f32
      %15 = vector.broadcast %cst_12 : f32 to vector<128x1xf32>
      %16 = arith.maximumf %14, %15 : vector<128x1xf32>
      %cst_13 = arith.constant 1.000000e+00 : f32
      %17 = vector.broadcast %cst_13 : f32 to vector<128x1xf32>
      %18 = arith.divf %17, %16 : vector<128x1xf32>
      %19 = vector.broadcast %18 : vector<128x1xf32> to vector<128x32xf32>
      %20 = arith.mulf %13, %19 : vector<128x32xf32>
      %21 = arith.truncf %20 : vector<128x32xf32> to vector<128x32xbf16>
      %c0_14 = arith.constant 0 : index
      %c0_15 = arith.constant 0 : index
      %22 = vector.load %arg4[%c0_14, %c0_15] : memref<128x32xbf16, #tpu.memory_space<vmem>>, vector<128x32xbf16>
      %c0_16 = arith.constant 0 : index
      %c0_17 = arith.constant 0 : index
      %23 = vector.load %arg5[%c0_16, %c0_17] : memref<32x128xbf16, #tpu.memory_space<vmem>>, vector<32x128xbf16>
      %cst_18 = arith.constant dense<0.000000e+00> : vector<128x128xf32>
      %24 = tpu.matmul %22, %23, %cst_18 {dimension_numbers = #tpu.dot_dimension_numbers<[1], [0], [0], [1], [0, 0, 1, 1], [], []>} : vector<128x32xbf16>, vector<32x128xbf16>, vector<128x128xf32> -> vector<128x128xf32>
      %c0_19 = arith.constant 0 : index
      %c0_20 = arith.constant 0 : index
      %25 = vector.load %arg6[%c0_19, %c0_20] : memref<32x128xbf16, #tpu.memory_space<vmem>>, vector<32x128xbf16>
      %cst_21 = arith.constant dense<0.000000e+00> : vector<128x128xf32>
      %26 = tpu.matmul %21, %25, %cst_21 {dimension_numbers = #tpu.dot_dimension_numbers<[1], [0], [0], [1], [0, 0, 1, 1], [], []>} : vector<128x32xbf16>, vector<32x128xbf16>, vector<128x128xf32> -> vector<128x128xf32>
      %27 = arith.addf %24, %26 : vector<128x128xf32>
      %c0_22 = arith.constant 0 : index
      %c0_23 = arith.constant 0 : index
      %28 = vector.load %arg7[%c0_22, %c0_23] : memref<1x128xf32, #tpu.memory_space<vmem>>, vector<1x128xf32>
      %29 = vector.broadcast %28 : vector<1x128xf32> to vector<128x128xf32>
      %30 = arith.addf %27, %29 : vector<128x128xf32>
      %cst_24 = arith.constant 0.000000e+00 : f32
      %31 = vector.broadcast %cst_24 : f32 to vector<128x128xf32>
      %32 = arith.maximumf %30, %31 : vector<128x128xf32>
      %33 = arith.truncf %32 : vector<128x128xf32> to vector<128x128xbf16>
      %c0_25 = arith.constant 0 : index
      %c0_26 = arith.constant 0 : index
      %34 = vector.load %arg8[%c0_25, %c0_26] : memref<128x128xbf16, #tpu.memory_space<vmem>>, vector<128x128xbf16>
      tpu.vector_store %arg8[%c0_25, %c0_26], %33 {strides = array<i32>} : memref<128x128xbf16, #tpu.memory_space<vmem>>, vector<128x128xbf16>,
    } else {
    }
    return
  }
  func.func @transform_0(%arg0: i32, %arg1: i32) -> (i32, i32) {
    %c0_i32 = arith.constant 0 : i32
    return %arg0, %arg1 : i32, i32
  }
  func.func @transform_1(%arg0: i32, %arg1: i32) -> (i32, i32) {
    %c0_i32 = arith.constant 0 : i32
    %c0_i32_0 = arith.constant 0 : i32
    return %arg1, %c0_i32 : i32, i32
  }
  func.func @transform_2(%arg0: i32, %arg1: i32) -> (i32, i32) {
    %c0_i32 = arith.constant 0 : i32
    %c0_i32_0 = arith.constant 0 : i32
    return %arg0, %c0_i32 : i32, i32
  }
  func.func @transform_3(%arg0: i32, %arg1: i32) -> (i32, i32) {
    %c0_i32 = arith.constant 0 : i32
    %c0_i32_0 = arith.constant 0 : i32
    %c0_i32_1 = arith.constant 0 : i32
    return %c0_i32, %c0_i32_0 : i32, i32
  }
  func.func @transform_4(%arg0: i32, %arg1: i32) -> (i32, i32) {
    %c0_i32 = arith.constant 0 : i32
    %c0_i32_0 = arith.constant 0 : i32
    %c0_i32_1 = arith.constant 0 : i32
    return %c0_i32, %c0_i32_0 : i32, i32
  }
  func.func @transform_5(%arg0: i32, %arg1: i32) -> (i32, i32) {
    %c0_i32 = arith.constant 0 : i32
    %c0_i32_0 = arith.constant 0 : i32
    %c0_i32_1 = arith.constant 0 : i32
    return %c0_i32, %c0_i32_0 : i32, i32
  }
  func.func @transform_6(%arg0: i32, %arg1: i32) -> (i32, i32) {
    %c0_i32 = arith.constant 0 : i32
    %c0_i32_0 = arith.constant 0 : i32
    return %arg0, %c0_i32 : i32, i32
  }
}

module attributes {stable_mosaic.version = 11 : i64} {
  func.func @_sage_layer_kernel(%arg0: i32, %arg1: i32, %arg2: memref<128x128xi8, #tpu.memory_space<vmem>>, %arg3: memref<128x128xbf16, #tpu.memory_space<vmem>>, %arg4: memref<128x128xbf16, #tpu.memory_space<vmem>>, %arg5: memref<128x128xbf16, #tpu.memory_space<vmem>>, %arg6: memref<128x128xbf16, #tpu.memory_space<vmem>>, %arg7: memref<1x128xf32, #tpu.memory_space<vmem>>, %arg8: memref<128x128xf32, #tpu.memory_space<vmem>>, %arg9: memref<128x128xf32, #tpu.memory_space<vmem>>) attributes {dimension_semantics = [#tpu.dimension_semantics<parallel>, #tpu.dimension_semantics<arbitrary>], iteration_bounds = array<i64: 1, 1>, scalar_prefetch = 0 : i64, scratch_operands = 1 : i64, tpu.core_type = #tpu.core_type<tc>, window_params = [{transform_indices = @transform_0, window_bounds = array<i64: 128, 128>}, {transform_indices = @transform_1, window_bounds = array<i64: 128, 128>}, {transform_indices = @transform_2, window_bounds = array<i64: 128, 128>}, {pipeline_mode = #tpu.pipeline_mode<synchronous>, transform_indices = @transform_3, window_bounds = array<i64: 128, 128>}, {pipeline_mode = #tpu.pipeline_mode<synchronous>, transform_indices = @transform_4, window_bounds = array<i64: 128, 128>}, {pipeline_mode = #tpu.pipeline_mode<synchronous>, transform_indices = @transform_5, window_bounds = array<i64: 1, 128>}, {transform_indices = @transform_6, window_bounds = array<i64: 128, 128>}]} {
    %c0_i32 = arith.constant 0 : i32
    %0 = arith.cmpi eq, %arg1, %c0_i32 : i32
    %1 = arith.extui %0 : i1 to i32
    %c0_i32_0 = arith.constant 0 : i32
    %2 = arith.cmpi ne, %1, %c0_i32_0 : i32
    scf.if %2 {
      %cst_10 = arith.constant 0.000000e+00 : f32
      %13 = vector.broadcast %cst_10 : f32 to vector<128x128xf32>
      %c0_11 = arith.constant 0 : index
      %c0_12 = arith.constant 0 : index
      %14 = vector.load %arg9[%c0_11, %c0_12] : memref<128x128xf32, #tpu.memory_space<vmem>>, vector<128x128xf32>
      tpu.vector_store %arg9[%c0_11, %c0_12], %13 {strides = array<i32>} : memref<128x128xf32, #tpu.memory_space<vmem>>, vector<128x128xf32>,
    } else {
    }
    %c0 = arith.constant 0 : index
    %c0_1 = arith.constant 0 : index
    %3 = vector.load %arg2[%c0, %c0_1] : memref<128x128xi8, #tpu.memory_space<vmem>>, vector<128x128xi8>
    %4 = arith.sitofp %3 : vector<128x128xi8> to vector<128x128xbf16>
    %c0_2 = arith.constant 0 : index
    %c0_3 = arith.constant 0 : index
    %5 = vector.load %arg9[%c0_2, %c0_3] : memref<128x128xf32, #tpu.memory_space<vmem>>, vector<128x128xf32>
    %c0_4 = arith.constant 0 : index
    %c0_5 = arith.constant 0 : index
    %6 = vector.load %arg3[%c0_4, %c0_5] : memref<128x128xbf16, #tpu.memory_space<vmem>>, vector<128x128xbf16>
    %cst = arith.constant dense<0.000000e+00> : vector<128x128xf32>
    %7 = tpu.matmul %4, %6, %cst {dimension_numbers = #tpu.dot_dimension_numbers<[1], [0], [0], [1], [0, 0, 1, 1], [], []>} : vector<128x128xbf16>, vector<128x128xbf16>, vector<128x128xf32> -> vector<128x128xf32>
    %8 = arith.addf %5, %7 : vector<128x128xf32>
    %c0_6 = arith.constant 0 : index
    %c0_7 = arith.constant 0 : index
    %9 = vector.load %arg9[%c0_6, %c0_7] : memref<128x128xf32, #tpu.memory_space<vmem>>, vector<128x128xf32>
    tpu.vector_store %arg9[%c0_6, %c0_7], %8 {strides = array<i32>} : memref<128x128xf32, #tpu.memory_space<vmem>>, vector<128x128xf32>,
    %c0_i32_8 = arith.constant 0 : i32
    %10 = arith.cmpi eq, %arg1, %c0_i32_8 : i32
    %11 = arith.extui %10 : i1 to i32
    %c0_i32_9 = arith.constant 0 : i32
    %12 = arith.cmpi ne, %11, %c0_i32_9 : i32
    scf.if %12 {
      %c0_10 = arith.constant 0 : index
      %c0_11 = arith.constant 0 : index
      %13 = vector.load %arg9[%c0_10, %c0_11] : memref<128x128xf32, #tpu.memory_space<vmem>>, vector<128x128xf32>
      %14 = vector.extract_strided_slice %13 {offsets = [0, 32], sizes = [128, 1], strides = [1, 1]} : vector<128x128xf32> to vector<128x1xf32>
      %cst_12 = arith.constant 1.000000e+00 : f32
      %15 = vector.broadcast %cst_12 : f32 to vector<128x1xf32>
      %16 = arith.maximumf %14, %15 : vector<128x1xf32>
      %cst_13 = arith.constant 1.000000e+00 : f32
      %17 = vector.broadcast %cst_13 : f32 to vector<128x1xf32>
      %18 = arith.divf %17, %16 : vector<128x1xf32>
      %19 = vector.broadcast %18 : vector<128x1xf32> to vector<128x128xf32>
      %20 = arith.mulf %13, %19 : vector<128x128xf32>
      %21 = arith.truncf %20 : vector<128x128xf32> to vector<128x128xbf16>
      %c0_14 = arith.constant 0 : index
      %c0_15 = arith.constant 0 : index
      %22 = vector.load %arg4[%c0_14, %c0_15] : memref<128x128xbf16, #tpu.memory_space<vmem>>, vector<128x128xbf16>
      %c0_16 = arith.constant 0 : index
      %c0_17 = arith.constant 0 : index
      %23 = vector.load %arg5[%c0_16, %c0_17] : memref<128x128xbf16, #tpu.memory_space<vmem>>, vector<128x128xbf16>
      %cst_18 = arith.constant dense<0.000000e+00> : vector<128x128xf32>
      %24 = tpu.matmul %22, %23, %cst_18 {dimension_numbers = #tpu.dot_dimension_numbers<[1], [0], [0], [1], [0, 0, 1, 1], [], []>} : vector<128x128xbf16>, vector<128x128xbf16>, vector<128x128xf32> -> vector<128x128xf32>
      %c0_19 = arith.constant 0 : index
      %c0_20 = arith.constant 0 : index
      %25 = vector.load %arg6[%c0_19, %c0_20] : memref<128x128xbf16, #tpu.memory_space<vmem>>, vector<128x128xbf16>
      %cst_21 = arith.constant dense<0.000000e+00> : vector<128x128xf32>
      %26 = tpu.matmul %21, %25, %cst_21 {dimension_numbers = #tpu.dot_dimension_numbers<[1], [0], [0], [1], [0, 0, 1, 1], [], []>} : vector<128x128xbf16>, vector<128x128xbf16>, vector<128x128xf32> -> vector<128x128xf32>
      %27 = arith.addf %24, %26 : vector<128x128xf32>
      %c0_22 = arith.constant 0 : index
      %c0_23 = arith.constant 0 : index
      %28 = vector.load %arg7[%c0_22, %c0_23] : memref<1x128xf32, #tpu.memory_space<vmem>>, vector<1x128xf32>
      %29 = vector.broadcast %28 : vector<1x128xf32> to vector<128x128xf32>
      %30 = arith.addf %27, %29 : vector<128x128xf32>
      %c0_24 = arith.constant 0 : index
      %c0_25 = arith.constant 0 : index
      %31 = vector.load %arg8[%c0_24, %c0_25] : memref<128x128xf32, #tpu.memory_space<vmem>>, vector<128x128xf32>
      tpu.vector_store %arg8[%c0_24, %c0_25], %30 {strides = array<i32>} : memref<128x128xf32, #tpu.memory_space<vmem>>, vector<128x128xf32>,
    } else {
    }
    return
  }
  func.func @transform_0(%arg0: i32, %arg1: i32) -> (i32, i32) {
    %c0_i32 = arith.constant 0 : i32
    return %arg0, %arg1 : i32, i32
  }
  func.func @transform_1(%arg0: i32, %arg1: i32) -> (i32, i32) {
    %c0_i32 = arith.constant 0 : i32
    %c0_i32_0 = arith.constant 0 : i32
    return %arg1, %c0_i32 : i32, i32
  }
  func.func @transform_2(%arg0: i32, %arg1: i32) -> (i32, i32) {
    %c0_i32 = arith.constant 0 : i32
    %c0_i32_0 = arith.constant 0 : i32
    return %arg0, %c0_i32 : i32, i32
  }
  func.func @transform_3(%arg0: i32, %arg1: i32) -> (i32, i32) {
    %c0_i32 = arith.constant 0 : i32
    %c0_i32_0 = arith.constant 0 : i32
    %c0_i32_1 = arith.constant 0 : i32
    return %c0_i32, %c0_i32_0 : i32, i32
  }
  func.func @transform_4(%arg0: i32, %arg1: i32) -> (i32, i32) {
    %c0_i32 = arith.constant 0 : i32
    %c0_i32_0 = arith.constant 0 : i32
    %c0_i32_1 = arith.constant 0 : i32
    return %c0_i32, %c0_i32_0 : i32, i32
  }
  func.func @transform_5(%arg0: i32, %arg1: i32) -> (i32, i32) {
    %c0_i32 = arith.constant 0 : i32
    %c0_i32_0 = arith.constant 0 : i32
    %c0_i32_1 = arith.constant 0 : i32
    return %c0_i32, %c0_i32_0 : i32, i32
  }
  func.func @transform_6(%arg0: i32, %arg1: i32) -> (i32, i32) {
    %c0_i32 = arith.constant 0 : i32
    %c0_i32_0 = arith.constant 0 : i32
    return %arg0, %c0_i32 : i32, i32
  }
}

</mosaic_0001>

<llo_original>
// kernel: graphsage_forward.3
$region0: #{graphsage_forward.3}
  #allocation0 [shape = 'u32[]', space=smem, size = 0x4, offset = 0x4, fixed_abs, tag = 'smem constant byte address 0x4 - core index']
  #allocation1 [shape = 'u32[144,128]{1,0:T(1,128)}', space=vmem, size = 0x12000, scoped, tag = 'internal scratch']
  #allocation2 [shape = 'f32[128,128]{1,0:T(8,128)}', space=vmem, size = 0x10000, scoped, tag = 'scratch operand']
  %s0 = inlined_call_operand.vmem [shape: s8[128,128], index: 0, kind: input, shape index: {}]
  %s1 = inlined_call_operand.vmem [shape: bf16[128,128], index: 1, kind: input, shape index: {}, may-alias: {1,2}]
  %s2 = inlined_call_operand.vmem [shape: bf16[128,128], index: 2, kind: input, shape index: {}, may-alias: {1,2}]
  %s3 = inlined_call_operand.vmem [shape: bf16[128,128], index: 3, kind: input, shape index: {}]
  %s4 = inlined_call_operand.vmem [shape: bf16[128,128], index: 4, kind: input, shape index: {}]
  %s5 = inlined_call_operand.vmem [shape: f32[1,128], index: 5, kind: input, shape index: {}]
  %s6 = inlined_call_operand.vmem [shape: f32[128,128], index: 6, kind: output, shape index: {}]
  %s7 = sld [smem:[#allocation0]]
  $region42: #{graphsage_forward.3} parent=0
    _
  %s9 = ssub.s32 1, %s7
  %s10 = scalar_select 0, %s9, %s7
  // Predicated region
  $region2: #{graphsage_forward.3} parent=0 // pred_check
    _
  $region3: #{graphsage_forward.3} parent=0 // pred_check_branch
    %12 = sbr.rel (0) target = $region5
  $region4: #{graphsage_forward.3} parent=0 // pred_region
    _
  $region5: #{graphsage_forward.3} parent=0 // pred_fallthru
    _
  // Predicated region
  $region6: #{graphsage_forward.3} parent=0 // pred_check
    _
  $region7: #{graphsage_forward.3} parent=0 // pred_check_branch
    %14 = sbr.rel (0) target = $region9
  $region8: #{graphsage_forward.3} parent=0 // pred_region
    _
  $region9: #{graphsage_forward.3} parent=0 // pred_fallthru
    _
  // Predicated region
  $region10: #{graphsage_forward.3} parent=0 // pred_check
    _
  $region11: #{graphsage_forward.3} parent=0 // pred_check_branch
    %16 = sbr.rel (0) target = $region13
  $region12: #{graphsage_forward.3} parent=0 // pred_region
    _
  $region13: #{graphsage_forward.3} parent=0 // pred_fallthru
    _
  // Predicated region
  $region14: #{graphsage_forward.3} parent=0 // pred_check
    _
  $region15: #{graphsage_forward.3} parent=0 // pred_check_branch
    %18 = sbr.rel (0) target = $region17
  $region16: #{graphsage_forward.3} parent=0 // pred_region
    _
  $region17: #{graphsage_forward.3} parent=0 // pred_fallthru
    _
  // Predicated region
  $region18: #{graphsage_forward.3} parent=0 // pred_check
    _
  $region19: #{graphsage_forward.3} parent=0 // pred_check_branch
    %20 = sbr.rel (0) target = $region21
  $region20: #{graphsage_forward.3} parent=0 // pred_region
    _
  $region21: #{graphsage_forward.3} parent=0 // pred_fallthru
    _
  // Predicated region
  $region22: #{graphsage_forward.3} parent=0 // pred_check
    _
  $region23: #{graphsage_forward.3} parent=0 // pred_check_branch
    %22 = sbr.rel (0) target = $region25
  $region24: #{graphsage_forward.3} parent=0 // pred_region
    _
  $region25: #{graphsage_forward.3} parent=0 // pred_fallthru
    _
  %p24 = scmp.eq.s32.totalorder 0, 0
  // Predicated region
  $region26: #{graphsage_forward.3} parent=0 // pred_check
    %p25 = pneg %p24
  $region27: #{graphsage_forward.3} parent=0 // pred_check_branch
    %27 = sbr.rel (%p25) target = $region29
  $region28: #{graphsage_forward.3} parent=0 // pred_region
    %28 = vst [vmem:[#allocation2] sm:$0xff] 0.0
    %29 = vst [vmem:[#allocation2 + $0x8] sm:$0xff] 0.0
    %30 = vst [vmem:[#allocation2 + $0x10] sm:$0xff] 0.0
    %31 = vst [vmem:[#allocation2 + $0x18] sm:$0xff] 0.0
    %32 = vst [vmem:[#allocation2 + $0x20] sm:$0xff] 0.0
    %33 = vst [vmem:[#allocation2 + $0x28] sm:$0xff] 0.0
    %34 = vst [vmem:[#allocation2 + $0x30] sm:$0xff] 0.0
    %35 = vst [vmem:[#allocation2 + $0x38] sm:$0xff] 0.0
    %36 = vst [vmem:[#allocation2 + $0x40] sm:$0xff] 0.0
    %37 = vst [vmem:[#allocation2 + $0x48] sm:$0xff] 0.0
    %38 = vst [vmem:[#allocation2 + $0x50] sm:$0xff] 0.0
    %39 = vst [vmem:[#allocation2 + $0x58] sm:$0xff] 0.0
    %40 = vst [vmem:[#allocation2 + $0x60] sm:$0xff] 0.0
    %41 = vst [vmem:[#allocation2 + $0x68] sm:$0xff] 0.0
    %42 = vst [vmem:[#allocation2 + $0x70] sm:$0xff] 0.0
    %43 = vst [vmem:[#allocation2 + $0x78] sm:$0xff] 0.0
  $region29: #{graphsage_forward.3} parent=0 // pred_fallthru
    _
  %v44 = vld [vmem:[%s0] sm:$0xff]
  %v45 = vld [vmem:[%s0 + $0x8] sm:$0xff]
  %v46 = vld [vmem:[%s0 + $0x10] sm:$0xff]
  %v47 = vld [vmem:[%s0 + $0x18] sm:$0xff]
  %v48 = vunpack.c.l.s8.bf16 %v44
  %v49 = vunpack.c.h.s8.bf16 %v44
  %v50 = vunpack.c.l.s8.bf16 %v45
  %v51 = vunpack.c.h.s8.bf16 %v45
  %v52 = vunpack.c.l.s8.bf16 %v46
  %v53 = vunpack.c.h.s8.bf16 %v46
  %v54 = vunpack.c.l.s8.bf16 %v47
  %v55 = vunpack.c.h.s8.bf16 %v47
  %v56 = vld [vmem:[#allocation2] sm:$0xff]
  %v57 = vld [vmem:[#allocation2 + $0x8] sm:$0xff]
  %v58 = vld [vmem:[#allocation2 + $0x10] sm:$0xff]
  %v59 = vld [vmem:[#allocation2 + $0x18] sm:$0xff]
  %v60 = vld [vmem:[#allocation2 + $0x20] sm:$0xff]
  %v61 = vld [vmem:[#allocation2 + $0x28] sm:$0xff]
  %v62 = vld [vmem:[#allocation2 + $0x30] sm:$0xff]
  %v63 = vld [vmem:[#allocation2 + $0x38] sm:$0xff]
  %v64 = vld [vmem:[#allocation2 + $0x40] sm:$0xff]
  %v65 = vld [vmem:[#allocation2 + $0x48] sm:$0xff]
  %v66 = vld [vmem:[#allocation2 + $0x50] sm:$0xff]
  %v67 = vld [vmem:[#allocation2 + $0x58] sm:$0xff]
  %v68 = vld [vmem:[#allocation2 + $0x60] sm:$0xff]
  %v69 = vld [vmem:[#allocation2 + $0x68] sm:$0xff]
  %v70 = vld [vmem:[#allocation2 + $0x70] sm:$0xff]
  %v71 = vld [vmem:[#allocation2 + $0x78] sm:$0xff]
  %v72 = vld [vmem:[%s1] sm:$0xf]
  %v73 = vld [vmem:[%s1 + $0x4] sm:$0xf]
  %v74 = vld [vmem:[%s1 + $0x8] sm:$0xf]
  %v75 = vld [vmem:[%s1 + $0xc] sm:$0xf]
  %v76 = vld [vmem:[%s1 + $0x10] sm:$0xf]
  %v77 = vld [vmem:[%s1 + $0x14] sm:$0xf]
  %v78 = vld [vmem:[%s1 + $0x18] sm:$0xf]
  %v79 = vld [vmem:[%s1 + $0x1c] sm:$0xf]
  %v80 = vld [vmem:[%s1 + $0x20] sm:$0xf]
  %v81 = vld [vmem:[%s1 + $0x24] sm:$0xf]
  %v82 = vld [vmem:[%s1 + $0x28] sm:$0xf]
  %v83 = vld [vmem:[%s1 + $0x2c] sm:$0xf]
  %v84 = vld [vmem:[%s1 + $0x30] sm:$0xf]
  %v85 = vld [vmem:[%s1 + $0x34] sm:$0xf]
  %v86 = vld [vmem:[%s1 + $0x38] sm:$0xf]
  %v87 = vld [vmem:[%s1 + $0x3c] sm:$0xf]
  %v104 = vunpack.c.l.b16 %v72
  %v105 = vunpack.c.l.b16 %v73
  %v106 = vunpack.c.l.b16 %v74
  %v107 = vunpack.c.l.b16 %v75
  %v108 = vunpack.c.l.b16 %v76
  %v109 = vunpack.c.l.b16 %v77
  %v110 = vunpack.c.l.b16 %v78
  %v111 = vunpack.c.l.b16 %v79
  %v112 = vunpack.c.l.b16 %v80
  %v113 = vunpack.c.l.b16 %v81
  %v114 = vunpack.c.l.b16 %v82
  %v115 = vunpack.c.l.b16 %v83
  %v116 = vunpack.c.l.b16 %v84
  %v117 = vunpack.c.l.b16 %v85
  %v118 = vunpack.c.l.b16 %v86
  %v119 = vunpack.c.l.b16 %v87
  %v120 = vpack.c.b16 %v105, %v104
  %v121 = vpack.c.b16 %v107, %v106
  %v122 = vpack.c.b16 %v109, %v108
  %v123 = vpack.c.b16 %v111, %v110
  %v124 = vpack.c.b16 %v113, %v112
  %v125 = vpack.c.b16 %v115, %v114
  %v126 = vpack.c.b16 %v117, %v116
  %v127 = vpack.c.b16 %v119, %v118
  %136 = vmatprep.subr.bf16.mxu0 0
  %137 = vmatpush1.bf16.msra.mxu0 %v120
  %138 = vmatprep.subr.bf16.mxu0 0
  %139 = vmatpush1.bf16.msra.mxu0 %v121
  %140 = vmatprep.subr.bf16.mxu0 0
  %141 = vmatpush1.bf16.msra.mxu0 %v122
  %142 = vmatprep.subr.bf16.mxu0 0
  %143 = vmatpush1.bf16.msra.mxu0 %v123
  %144 = vmatprep.subr.bf16.mxu0 0
  %145 = vmatpush1.bf16.msra.mxu0 %v124
  %146 = vmatprep.subr.bf16.mxu0 0
  %147 = vmatpush1.bf16.msra.mxu0 %v125
  %148 = vmatprep.subr.bf16.mxu0 0
  %149 = vmatpush1.bf16.msra.mxu0 %v126
  %150 = vmatprep.subr.bf16.mxu0 0
  %151 = vmatpush1.bf16.msra.mxu0 %v127
  %152 = vmatprep.subr.bf16.mxu0 0
  %153 = vmatpush1.bf16.msra.mxu0 0
  %154 = vmatprep.subr.bf16.mxu0 0
  %155 = vmatpush1.bf16.msra.mxu0 0
  %156 = vmatprep.subr.bf16.mxu0 0
  %157 = vmatpush1.bf16.msra.mxu0 0
  %158 = vmatprep.subr.bf16.mxu0 0
  %159 = vmatpush1.bf16.msra.mxu0 0
  %160 = vmatprep.subr.bf16.mxu0 0
  %161 = vmatpush1.bf16.msra.mxu0 0
  %162 = vmatprep.subr.bf16.mxu0 0
  %163 = vmatpush1.bf16.msra.mxu0 0
  %164 = vmatprep.subr.bf16.mxu0 0
  %165 = vmatpush1.bf16.msra.mxu0 0
  %166 = vmatprep.subr.bf16.mxu0 0
  %167 = vmatpush1.bf16.msra.mxu0 0
  %168 = vmatprep.mubr.bf16.mxu0 0
  %169 = vmatmul.mubr.bf16.gmra.mrb[0].mxu0 %v48
  %v170 = vpop.f32.mrb[0].mxu0
  %v171 = vadd.f32 0.0, %v170
  %v172 = vpop.f32.mrb[0].mxu0
  %v173 = vpop.f32.mrb[0].mxu0
  %v174 = vadd.f32 0.0, %v173
  %v175 = vpop.f32.mrb[0].mxu0
  %176 = vmatprep.mubr.bf16.mxu0 0
  %177 = vmatmul.mubr.bf16.gmra.mrb[0].mxu0 %v49
  %v178 = vpop.f32.mrb[0].mxu0
  %v179 = vadd.f32 0.0, %v178
  %v180 = vpop.f32.mrb[0].mxu0
  %v181 = vpop.f32.mrb[0].mxu0
  %v182 = vadd.f32 0.0, %v181
  %v183 = vpop.f32.mrb[0].mxu0
  %184 = vmatprep.mubr.bf16.mxu0 0
  %185 = vmatmul.mubr.bf16.gmra.mrb[0].mxu0 %v50
  %v186 = vpop.f32.mrb[0].mxu0
  %v187 = vadd.f32 0.0, %v186
  %v188 = vpop.f32.mrb[0].mxu0
  %v189 = vpop.f32.mrb[0].mxu0
  %v190 = vadd.f32 0.0, %v189
  %v191 = vpop.f32.mrb[0].mxu0
  %192 = vmatprep.mubr.bf16.mxu0 0
  %193 = vmatmul.mubr.bf16.gmra.mrb[0].mxu0 %v51
  %v194 = vpop.f32.mrb[0].mxu0
  %v195 = vadd.f32 0.0, %v194
  %v196 = vpop.f32.mrb[0].mxu0
  %v197 = vpop.f32.mrb[0].mxu0
  %v198 = vadd.f32 0.0, %v197
  %v199 = vpop.f32.mrb[0].mxu0
  %200 = vmatprep.mubr.bf16.mxu0 0
  %201 = vmatmul.mubr.bf16.gmra.mrb[0].mxu0 %v52
  %v202 = vpop.f32.mrb[0].mxu0
  %v203 = vadd.f32 0.0, %v202
  %v204 = vpop.f32.mrb[0].mxu0
  %v205 = vpop.f32.mrb[0].mxu0
  %v206 = vadd.f32 0.0, %v205
  %v207 = vpop.f32.mrb[0].mxu0
  %208 = vmatprep.mubr.bf16.mxu0 0
  %209 = vmatmul.mubr.bf16.gmra.mrb[0].mxu0 %v53
  %v210 = vpop.f32.mrb[0].mxu0
  %v211 = vadd.f32 0.0, %v210
  %v212 = vpop.f32.mrb[0].mxu0
  %v213 = vpop.f32.mrb[0].mxu0
  %v214 = vadd.f32 0.0, %v213
  %v215 = vpop.f32.mrb[0].mxu0
  %216 = vmatprep.mubr.bf16.mxu0 0
  %217 = vmatmul.mubr.bf16.gmra.mrb[0].mxu0 %v54
  %v218 = vpop.f32.mrb[0].mxu0
  %v219 = vadd.f32 0.0, %v218
  %v220 = vpop.f32.mrb[0].mxu0
  %v221 = vpop.f32.mrb[0].mxu0
  %v222 = vadd.f32 0.0, %v221
  %v223 = vpop.f32.mrb[0].mxu0
  %224 = vmatprep.mubr.bf16.mxu0 0
  %225 = vmatmul.mubr.bf16.gmra.mrb[0].mxu0 %v55
  %v226 = vpop.f32.mrb[0].mxu0
  %v227 = vadd.f32 0.0, %v226
  %v228 = vpop.f32.mrb[0].mxu0
  %v229 = vpop.f32.mrb[0].mxu0
  %v230 = vadd.f32 0.0, %v229
  %v231 = vpop.f32.mrb[0].mxu0
  %232 = vdwg.mxu0
  %v233 = vadd.f32 %v56, %v171
  %v234 = vadd.f32 %v57, %v174
  %v235 = vadd.f32 %v58, %v179
  %v236 = vadd.f32 %v59, %v182
  %v237 = vadd.f32 %v60, %v187
  %v238 = vadd.f32 %v61, %v190
  %v239 = vadd.f32 %v62, %v195
  %v240 = vadd.f32 %v63, %v198
  %v241 = vadd.f32 %v64, %v203
  %v242 = vadd.f32 %v65, %v206
  %v243 = vadd.f32 %v66, %v211
  %v244 = vadd.f32 %v67, %v214
  %v245 = vadd.f32 %v68, %v219
  %v246 = vadd.f32 %v69, %v222
  %v247 = vadd.f32 %v70, %v227
  %v248 = vadd.f32 %v71, %v230
  %249 = vst [vmem:[#allocation2] sm:$0xff] %v233
  %250 = vst [vmem:[#allocation2 + $0x8] sm:$0xff] %v234
  %251 = vst [vmem:[#allocation2 + $0x10] sm:$0xff] %v235
  %252 = vst [vmem:[#allocation2 + $0x18] sm:$0xff] %v236
  %253 = vst [vmem:[#allocation2 + $0x20] sm:$0xff] %v237
  %254 = vst [vmem:[#allocation2 + $0x28] sm:$0xff] %v238
  %255 = vst [vmem:[#allocation2 + $0x30] sm:$0xff] %v239
  %256 = vst [vmem:[#allocation2 + $0x38] sm:$0xff] %v240
  %257 = vst [vmem:[#allocation2 + $0x40] sm:$0xff] %v241
  %258 = vst [vmem:[#allocation2 + $0x48] sm:$0xff] %v242
  %259 = vst [vmem:[#allocation2 + $0x50] sm:$0xff] %v243
  %260 = vst [vmem:[#allocation2 + $0x58] sm:$0xff] %v244
  %261 = vst [vmem:[#allocation2 + $0x60] sm:$0xff] %v245
  %262 = vst [vmem:[#allocation2 + $0x68] sm:$0xff] %v246
  %263 = vst [vmem:[#allocation2 + $0x70] sm:$0xff] %v247
  %264 = vst [vmem:[#allocation2 + $0x78] sm:$0xff] %v248
  // Predicated region
  $region30: #{graphsage_forward.3} parent=0 // pred_check
    %p265 = pneg %p24
  $region31: #{graphsage_forward.3} parent=0 // pred_check_branch
    %267 = sbr.rel (%p265) target = $region33
  $region32: #{graphsage_forward.3} parent=0 // pred_region
    %v268 = vld [vmem:[#allocation2] sm:$0xff]
    %v269 = vld [vmem:[#allocation2 + $0x8] sm:$0xff]
    %v270 = vld [vmem:[#allocation2 + $0x10] sm:$0xff]
    %v271 = vld [vmem:[#allocation2 + $0x18] sm:$0xff]
    %v272 = vld [vmem:[#allocation2 + $0x20] sm:$0xff]
    %v273 = vld [vmem:[#allocation2 + $0x28] sm:$0xff]
    %v274 = vld [vmem:[#allocation2 + $0x30] sm:$0xff]
    %v275 = vld [vmem:[#allocation2 + $0x38] sm:$0xff]
    %v276 = vld [vmem:[#allocation2 + $0x40] sm:$0xff]
    %v277 = vld [vmem:[#allocation2 + $0x48] sm:$0xff]
    %v278 = vld [vmem:[#allocation2 + $0x50] sm:$0xff]
    %v279 = vld [vmem:[#allocation2 + $0x58] sm:$0xff]
    %v280 = vld [vmem:[#allocation2 + $0x60] sm:$0xff]
    %v281 = vld [vmem:[#allocation2 + $0x68] sm:$0xff]
    %v282 = vld [vmem:[#allocation2 + $0x70] sm:$0xff]
    %v283 = vld [vmem:[#allocation2 + $0x78] sm:$0xff]
    %v284 = vmax.f32 %v268, 1.0
    %v285 = vmax.f32 %v269, 1.0
    %v286 = vmax.f32 %v270, 1.0
    %v287 = vmax.f32 %v271, 1.0
    %v288 = vmax.f32 %v272, 1.0
    %v289 = vmax.f32 %v273, 1.0
    %v290 = vmax.f32 %v274, 1.0
    %v291 = vmax.f32 %v275, 1.0
    %v292 = vmax.f32 %v276, 1.0
    %v293 = vmax.f32 %v277, 1.0
    %v294 = vmax.f32 %v278, 1.0
    %v295 = vmax.f32 %v279, 1.0
    %v296 = vmax.f32 %v280, 1.0
    %v297 = vmax.f32 %v281, 1.0
    %v298 = vmax.f32 %v282, 1.0
    %v299 = vmax.f32 %v283, 1.0
    %v300 = vrcp.pop %v284
    %v301 = vmul.f32 1.0, %v300
    %v302 = vrcp.pop %v285
    %v303 = vmul.f32 1.0, %v302
    %v304 = vrcp.pop %v286
    %v305 = vmul.f32 1.0, %v304
    %v306 = vrcp.pop %v287
    %v307 = vmul.f32 1.0, %v306
    %v308 = vrcp.pop %v288
    %v309 = vmul.f32 1.0, %v308
    %v310 = vrcp.pop %v289
    %v311 = vmul.f32 1.0, %v310
    %v312 = vrcp.pop %v290
    %v313 = vmul.f32 1.0, %v312
    %v314 = vrcp.pop %v291
    %v315 = vmul.f32 1.0, %v314
    %v316 = vrcp.pop %v292
    %v317 = vmul.f32 1.0, %v316
    %v318 = vrcp.pop %v293
    %v319 = vmul.f32 1.0, %v318
    %v320 = vrcp.pop %v294
    %v321 = vmul.f32 1.0, %v320
    %v322 = vrcp.pop %v295
    %v323 = vmul.f32 1.0, %v322
    %v324 = vrcp.pop %v296
    %v325 = vmul.f32 1.0, %v324
    %v326 = vrcp.pop %v297
    %v327 = vmul.f32 1.0, %v326
    %v328 = vrcp.pop %v298
    %v329 = vmul.f32 1.0, %v328
    %v330 = vrcp.pop %v299
    %v331 = vmul.f32 1.0, %v330
    %333 = vset.pattern.permute.xlu0 32
    %334 = vperm.xlu0 %333, %v301
    %v335 = vpop.permute.xlu0 %334
    %338 = vset.pattern.permute.xlu0 32
    %339 = vperm.xlu0 %338, %v303
    %v340 = vpop.permute.xlu0 %339
    %343 = vset.pattern.permute.xlu0 32
    %344 = vperm.xlu0 %343, %v305
    %v345 = vpop.permute.xlu0 %344
    %348 = vset.pattern.permute.xlu0 32
    %349 = vperm.xlu0 %348, %v307
    %v350 = vpop.permute.xlu0 %349
    %353 = vset.pattern.permute.xlu0 32
    %354 = vperm.xlu0 %353, %v309
    %v355 = vpop.permute.xlu0 %354
    %358 = vset.pattern.permute.xlu0 32
    %359 = vperm.xlu0 %358, %v311
    %v360 = vpop.permute.xlu0 %359
    %363 = vset.pattern.permute.xlu0 32
    %364 = vperm.xlu0 %363, %v313
    %v365 = vpop.permute.xlu0 %364
    %368 = vset.pattern.permute.xlu0 32
    %369 = vperm.xlu0 %368, %v315
    %v370 = vpop.permute.xlu0 %369
    %373 = vset.pattern.permute.xlu0 32
    %374 = vperm.xlu0 %373, %v317
    %v375 = vpop.permute.xlu0 %374
    %378 = vset.pattern.permute.xlu0 32
    %379 = vperm.xlu0 %378, %v319
    %v380 = vpop.permute.xlu0 %379
    %383 = vset.pattern.permute.xlu0 32
    %384 = vperm.xlu0 %383, %v321
    %v385 = vpop.permute.xlu0 %384
    %388 = vset.pattern.permute.xlu0 32
    %389 = vperm.xlu0 %388, %v323
    %v390 = vpop.permute.xlu0 %389
    %393 = vset.pattern.permute.xlu0 32
    %394 = vperm.xlu0 %393, %v325
    %v395 = vpop.permute.xlu0 %394
    %398 = vset.pattern.permute.xlu0 32
    %399 = vperm.xlu0 %398, %v327
    %v400 = vpop.permute.xlu0 %399
    %403 = vset.pattern.permute.xlu0 32
    %404 = vperm.xlu0 %403, %v329
    %v405 = vpop.permute.xlu0 %404
    %408 = vset.pattern.permute.xlu0 32
    %409 = vperm.xlu0 %408, %v331
    %v410 = vpop.permute.xlu0 %409
    %v412 = vmul.f32 %v268, %v335
    %v413 = vmul.f32 %v269, %v340
    %v414 = vmul.f32 %v270, %v345
    %v415 = vmul.f32 %v271, %v350
    %v416 = vmul.f32 %v272, %v355
    %v417 = vmul.f32 %v273, %v360
    %v418 = vmul.f32 %v274, %v365
    %v419 = vmul.f32 %v275, %v370
    %v420 = vmul.f32 %v276, %v375
    %v421 = vmul.f32 %v277, %v380
    %v422 = vmul.f32 %v278, %v385
    %v423 = vmul.f32 %v279, %v390
    %v424 = vmul.f32 %v280, %v395
    %v425 = vmul.f32 %v281, %v400
    %v426 = vmul.f32 %v282, %v405
    %v427 = vmul.f32 %v283, %v410
    %v428 = vpack.c.bf16 %v413, %v412
    %v429 = vpack.c.bf16 %v415, %v414
    %v430 = vpack.c.bf16 %v417, %v416
    %v431 = vpack.c.bf16 %v419, %v418
    %v432 = vpack.c.bf16 %v421, %v420
    %v433 = vpack.c.bf16 %v423, %v422
    %v434 = vpack.c.bf16 %v425, %v424
    %v435 = vpack.c.bf16 %v427, %v426
    %v436 = vld [vmem:[%s2] sm:$0xf]
    %v437 = vld [vmem:[%s2 + $0x4] sm:$0xf]
    %v438 = vld [vmem:[%s2 + $0x8] sm:$0xf]
    %v439 = vld [vmem:[%s2 + $0xc] sm:$0xf]
    %v440 = vld [vmem:[%s2 + $0x10] sm:$0xf]
    %v441 = vld [vmem:[%s2 + $0x14] sm:$0xf]
    %v442 = vld [vmem:[%s2 + $0x18] sm:$0xf]
    %v443 = vld [vmem:[%s2 + $0x1c] sm:$0xf]
    %v444 = vld [vmem:[%s2 + $0x20] sm:$0xf]
    %v445 = vld [vmem:[%s2 + $0x24] sm:$0xf]
    %v446 = vld [vmem:[%s2 + $0x28] sm:$0xf]
    %v447 = vld [vmem:[%s2 + $0x2c] sm:$0xf]
    %v448 = vld [vmem:[%s2 + $0x30] sm:$0xf]
    %v449 = vld [vmem:[%s2 + $0x34] sm:$0xf]
    %v450 = vld [vmem:[%s2 + $0x38] sm:$0xf]
    %v451 = vld [vmem:[%s2 + $0x3c] sm:$0xf]
    %v452 = vld [vmem:[%s3] sm:$0xf]
    %v453 = vld [vmem:[%s3 + $0x4] sm:$0xf]
    %v454 = vld [vmem:[%s3 + $0x8] sm:$0xf]
    %v455 = vld [vmem:[%s3 + $0xc] sm:$0xf]
    %v456 = vld [vmem:[%s3 + $0x10] sm:$0xf]
    %v457 = vld [vmem:[%s3 + $0x14] sm:$0xf]
    %v458 = vld [vmem:[%s3 + $0x18] sm:$0xf]
    %v459 = vld [vmem:[%s3 + $0x1c] sm:$0xf]
    %v460 = vld [vmem:[%s3 + $0x20] sm:$0xf]
    %v461 = vld [vmem:[%s3 + $0x24] sm:$0xf]
    %v462 = vld [vmem:[%s3 + $0x28] sm:$0xf]
    %v463 = vld [vmem:[%s3 + $0x2c] sm:$0xf]
    %v464 = vld [vmem:[%s3 + $0x30] sm:$0xf]
    %v465 = vld [vmem:[%s3 + $0x34] sm:$0xf]
    %v466 = vld [vmem:[%s3 + $0x38] sm:$0xf]
    %v467 = vld [vmem:[%s3 + $0x3c] sm:$0xf]
    %v468 = vld [vmem:[%s4] sm:$0xf]
    %v469 = vld [vmem:[%s4 + $0x4] sm:$0xf]
    %v470 = vld [vmem:[%s4 + $0x8] sm:$0xf]
    %v471 = vld [vmem:[%s4 + $0xc] sm:$0xf]
    %v472 = vld [vmem:[%s4 + $0x10] sm:$0xf]
    %v473 = vld [vmem:[%s4 + $0x14] sm:$0xf]
    %v474 = vld [vmem:[%s4 + $0x18] sm:$0xf]
    %v475 = vld [vmem:[%s4 + $0x1c] sm:$0xf]
    %v476 = vld [vmem:[%s4 + $0x20] sm:$0xf]
    %v477 = vld [vmem:[%s4 + $0x24] sm:$0xf]
    %v478 = vld [vmem:[%s4 + $0x28] sm:$0xf]
    %v479 = vld [vmem:[%s4 + $0x2c] sm:$0xf]
    %v480 = vld [vmem:[%s4 + $0x30] sm:$0xf]
    %v481 = vld [vmem:[%s4 + $0x34] sm:$0xf]
    %v482 = vld [vmem:[%s4 + $0x38] sm:$0xf]
    %v483 = vld [vmem:[%s4 + $0x3c] sm:$0xf]
    %v500 = vunpack.c.l.b16 %v468
    %v501 = vunpack.c.l.b16 %v469
    %v502 = vunpack.c.l.b16 %v470
    %v503 = vunpack.c.l.b16 %v471
    %v504 = vunpack.c.l.b16 %v472
    %v505 = vunpack.c.l.b16 %v473
    %v506 = vunpack.c.l.b16 %v474
    %v507 = vunpack.c.l.b16 %v475
    %v508 = vunpack.c.l.b16 %v476
    %v509 = vunpack.c.l.b16 %v477
    %v510 = vunpack.c.l.b16 %v478
    %v511 = vunpack.c.l.b16 %v479
    %v512 = vunpack.c.l.b16 %v480
    %v513 = vunpack.c.l.b16 %v481
    %v514 = vunpack.c.l.b16 %v482
    %v515 = vunpack.c.l.b16 %v483
    %v516 = vpack.c.b16 %v501, %v500
    %v517 = vpack.c.b16 %v503, %v502
    %v518 = vpack.c.b16 %v505, %v504
    %v519 = vpack.c.b16 %v507, %v506
    %v520 = vpack.c.b16 %v509, %v508
    %v521 = vpack.c.b16 %v511, %v510
    %v522 = vpack.c.b16 %v513, %v512
    %v523 = vpack.c.b16 %v515, %v514
    %532 = vmatprep.subr.bf16.mxu0 0
    %533 = vmatpush1.bf16.msra.mxu0 %v516
    %534 = vmatprep.subr.bf16.mxu0 0
    %535 = vmatpush1.bf16.msra.mxu0 %v517
    %536 = vmatprep.subr.bf16.mxu0 0
    %537 = vmatpush1.bf16.msra.mxu0 %v518
    %538 = vmatprep.subr.bf16.mxu0 0
    %539 = vmatpush1.bf16.msra.mxu0 %v519
    %540 = vmatprep.subr.bf16.mxu0 0
    %541 = vmatpush1.bf16.msra.mxu0 %v520
    %542 = vmatprep.subr.bf16.mxu0 0
    %543 = vmatpush1.bf16.msra.mxu0 %v521
    %544 = vmatprep.subr.bf16.mxu0 0
    %545 = vmatpush1.bf16.msra.mxu0 %v522
    %546 = vmatprep.subr.bf16.mxu0 0
    %547 = vmatpush1.bf16.msra.mxu0 %v523
    %548 = vmatprep.subr.bf16.mxu0 0
    %549 = vmatpush1.bf16.msra.mxu0 0
    %550 = vmatprep.subr.bf16.mxu0 0
    %551 = vmatpush1.bf16.msra.mxu0 0
    %552 = vmatprep.subr.bf16.mxu0 0
    %553 = vmatpush1.bf16.msra.mxu0 0
    %554 = vmatprep.subr.bf16.mxu0 0
    %555 = vmatpush1.bf16.msra.mxu0 0
    %556 = vmatprep.subr.bf16.mxu0 0
    %557 = vmatpush1.bf16.msra.mxu0 0
    %558 = vmatprep.subr.bf16.mxu0 0
    %559 = vmatpush1.bf16.msra.mxu0 0
    %560 = vmatprep.subr.bf16.mxu0 0
    %561 = vmatpush1.bf16.msra.mxu0 0
    %562 = vmatprep.subr.bf16.mxu0 0
    %563 = vmatpush1.bf16.msra.mxu0 0
    %564 = vmatprep.mubr.bf16.mxu0 0
    %565 = vmatmul.mubr.bf16.gmra.mrb[0].mxu0 %v428
    %v566 = vpop.f32.mrb[0].mxu0
    %v567 = vadd.f32 0.0, %v566
    %v568 = vpop.f32.mrb[0].mxu0
    %v569 = vpop.f32.mrb[0].mxu0
    %v570 = vadd.f32 0.0, %v569
    %v571 = vpop.f32.mrb[0].mxu0
    %572 = vmatprep.mubr.bf16.mxu0 0
    %573 = vmatmul.mubr.bf16.gmra.mrb[0].mxu0 %v429
    %v574 = vpop.f32.mrb[0].mxu0
    %v575 = vadd.f32 0.0, %v574
    %v576 = vpop.f32.mrb[0].mxu0
    %v577 = vpop.f32.mrb[0].mxu0
    %v578 = vadd.f32 0.0, %v577
    %v579 = vpop.f32.mrb[0].mxu0
    %580 = vmatprep.mubr.bf16.mxu0 0
    %581 = vmatmul.mubr.bf16.gmra.mrb[0].mxu0 %v430
    %v582 = vpop.f32.mrb[0].mxu0
    %v583 = vadd.f32 0.0, %v582
    %v584 = vpop.f32.mrb[0].mxu0
    %v585 = vpop.f32.mrb[0].mxu0
    %v586 = vadd.f32 0.0, %v585
    %v587 = vpop.f32.mrb[0].mxu0
    %588 = vmatprep.mubr.bf16.mxu0 0
    %589 = vmatmul.mubr.bf16.gmra.mrb[0].mxu0 %v431
    %v590 = vpop.f32.mrb[0].mxu0
    %v591 = vadd.f32 0.0, %v590
    %v592 = vpop.f32.mrb[0].mxu0
    %v593 = vpop.f32.mrb[0].mxu0
    %v594 = vadd.f32 0.0, %v593
    %v595 = vpop.f32.mrb[0].mxu0
    %596 = vmatprep.mubr.bf16.mxu0 0
    %597 = vmatmul.mubr.bf16.gmra.mrb[0].mxu0 %v432
    %v598 = vpop.f32.mrb[0].mxu0
    %v599 = vadd.f32 0.0, %v598
    %v600 = vpop.f32.mrb[0].mxu0
    %v601 = vpop.f32.mrb[0].mxu0
    %v602 = vadd.f32 0.0, %v601
    %v603 = vpop.f32.mrb[0].mxu0
    %604 = vmatprep.mubr.bf16.mxu0 0
    %605 = vmatmul.mubr.bf16.gmra.mrb[0].mxu0 %v433
    %v606 = vpop.f32.mrb[0].mxu0
    %v607 = vadd.f32 0.0, %v606
    %v608 = vpop.f32.mrb[0].mxu0
    %v609 = vpop.f32.mrb[0].mxu0
    %v610 = vadd.f32 0.0, %v609
    %v611 = vpop.f32.mrb[0].mxu0
    %612 = vmatprep.mubr.bf16.mxu0 0
    %613 = vmatmul.mubr.bf16.gmra.mrb[0].mxu0 %v434
    %v614 = vpop.f32.mrb[0].mxu0
    %v615 = vadd.f32 0.0, %v614
    %v616 = vpop.f32.mrb[0].mxu0
    %v617 = vpop.f32.mrb[0].mxu0
    %v618 = vadd.f32 0.0, %v617
    %v619 = vpop.f32.mrb[0].mxu0
    %620 = vmatprep.mubr.bf16.mxu0 0
    %621 = vmatmul.mubr.bf16.gmra.mrb[0].mxu0 %v435
    %v622 = vpop.f32.mrb[0].mxu0
    %v623 = vadd.f32 0.0, %v622
    %v624 = vpop.f32.mrb[0].mxu0
    %v625 = vpop.f32.mrb[0].mxu0
    %v626 = vadd.f32 0.0, %v625
    %v627 = vpop.f32.mrb[0].mxu0
    %628 = vdwg.mxu0
    %v645 = vunpack.c.l.b16 %v436
    %v646 = vunpack.c.l.b16 %v437
    %v647 = vunpack.c.l.b16 %v438
    %v648 = vunpack.c.l.b16 %v439
    %v649 = vunpack.c.l.b16 %v440
    %v650 = vunpack.c.l.b16 %v441
    %v651 = vunpack.c.l.b16 %v442
    %v652 = vunpack.c.l.b16 %v443
    %v653 = vunpack.c.l.b16 %v444
    %v654 = vunpack.c.l.b16 %v445
    %v655 = vunpack.c.l.b16 %v446
    %v656 = vunpack.c.l.b16 %v447
    %v657 = vunpack.c.l.b16 %v448
    %v658 = vunpack.c.l.b16 %v449
    %v659 = vunpack.c.l.b16 %v450
    %v660 = vunpack.c.l.b16 %v451
    %v661 = vpack.c.b16 %v646, %v645
    %v662 = vpack.c.b16 %v648, %v647
    %v663 = vpack.c.b16 %v650, %v649
    %v664 = vpack.c.b16 %v652, %v651
    %v665 = vpack.c.b16 %v654, %v653
    %v666 = vpack.c.b16 %v656, %v655
    %v667 = vpack.c.b16 %v658, %v657
    %v668 = vpack.c.b16 %v660, %v659
    %v693 = vunpack.c.l.b16 %v452
    %v694 = vunpack.c.l.b16 %v453
    %v695 = vunpack.c.l.b16 %v454
    %v696 = vunpack.c.l.b16 %v455
    %v697 = vunpack.c.l.b16 %v456
    %v698 = vunpack.c.l.b16 %v457
    %v699 = vunpack.c.l.b16 %v458
    %v700 = vunpack.c.l.b16 %v459
    %v701 = vunpack.c.l.b16 %v460
    %v702 = vunpack.c.l.b16 %v461
    %v703 = vunpack.c.l.b16 %v462
    %v704 = vunpack.c.l.b16 %v463
    %v705 = vunpack.c.l.b16 %v464
    %v706 = vunpack.c.l.b16 %v465
    %v707 = vunpack.c.l.b16 %v466
    %v708 = vunpack.c.l.b16 %v467
    %v709 = vpack.c.b16 %v694, %v693
    %v710 = vpack.c.b16 %v696, %v695
    %v711 = vpack.c.b16 %v698, %v697
    %v712 = vpack.c.b16 %v700, %v699
    %v713 = vpack.c.b16 %v702, %v701
    %v714 = vpack.c.b16 %v704, %v703
    %v715 = vpack.c.b16 %v706, %v705
    %v716 = vpack.c.b16 %v708, %v707
    %725 = vmatprep.subr.bf16.mxu0 0
    %726 = vmatpush1.bf16.msra.mxu0 %v709
    %727 = vmatprep.subr.bf16.mxu0 0
    %728 = vmatpush1.bf16.msra.mxu0 %v710
    %729 = vmatprep.subr.bf16.mxu0 0
    %730 = vmatpush1.bf16.msra.mxu0 %v711
    %731 = vmatprep.subr.bf16.mxu0 0
    %732 = vmatpush1.bf16.msra.mxu0 %v712
    %733 = vmatprep.subr.bf16.mxu0 0
    %734 = vmatpush1.bf16.msra.mxu0 %v713
    %735 = vmatprep.subr.bf16.mxu0 0
    %736 = vmatpush1.bf16.msra.mxu0 %v714
    %737 = vmatprep.subr.bf16.mxu0 0
    %738 = vmatpush1.bf16.msra.mxu0 %v715
    %739 = vmatprep.subr.bf16.mxu0 0
    %740 = vmatpush1.bf16.msra.mxu0 %v716
    %741 = vmatprep.subr.bf16.mxu0 0
    %742 = vmatpush1.bf16.msra.mxu0 0
    %743 = vmatprep.subr.bf16.mxu0 0
    %744 = vmatpush1.bf16.msra.mxu0 0
    %745 = vmatprep.subr.bf16.mxu0 0
    %746 = vmatpush1.bf16.msra.mxu0 0
    %747 = vmatprep.subr.bf16.mxu0 0
    %748 = vmatpush1.bf16.msra.mxu0 0
    %749 = vmatprep.subr.bf16.mxu0 0
    %750 = vmatpush1.bf16.msra.mxu0 0
    %751 = vmatprep.subr.bf16.mxu0 0
    %752 = vmatpush1.bf16.msra.mxu0 0
    %753 = vmatprep.subr.bf16.mxu0 0
    %754 = vmatpush1.bf16.msra.mxu0 0
    %755 = vmatprep.subr.bf16.mxu0 0
    %756 = vmatpush1.bf16.msra.mxu0 0
    %757 = vmatprep.mubr.bf16.mxu0 0
    %758 = vmatmul.mubr.bf16.gmra.mrb[0].mxu0 %v661
    %v759 = vpop.f32.mrb[0].mxu0
    %v760 = vadd.f32 %v567, %v759
    %v761 = vpop.f32.mrb[0].mxu0
    %v762 = vpop.f32.mrb[0].mxu0
    %v763 = vadd.f32 %v570, %v762
    %v764 = vpop.f32.mrb[0].mxu0
    %765 = vmatprep.mubr.bf16.mxu0 0
    %766 = vmatmul.mubr.bf16.gmra.mrb[0].mxu0 %v662
    %v767 = vpop.f32.mrb[0].mxu0
    %v768 = vadd.f32 %v575, %v767
    %v769 = vpop.f32.mrb[0].mxu0
    %v770 = vpop.f32.mrb[0].mxu0
    %v771 = vadd.f32 %v578, %v770
    %v772 = vpop.f32.mrb[0].mxu0
    %773 = vmatprep.mubr.bf16.mxu0 0
    %774 = vmatmul.mubr.bf16.gmra.mrb[0].mxu0 %v663
    %v775 = vpop.f32.mrb[0].mxu0
    %v776 = vadd.f32 %v583, %v775
    %v777 = vpop.f32.mrb[0].mxu0
    %v778 = vpop.f32.mrb[0].mxu0
    %v779 = vadd.f32 %v586, %v778
    %v780 = vpop.f32.mrb[0].mxu0
    %781 = vmatprep.mubr.bf16.mxu0 0
    %782 = vmatmul.mubr.bf16.gmra.mrb[0].mxu0 %v664
    %v783 = vpop.f32.mrb[0].mxu0
    %v784 = vadd.f32 %v591, %v783
    %v785 = vpop.f32.mrb[0].mxu0
    %v786 = vpop.f32.mrb[0].mxu0
    %v787 = vadd.f32 %v594, %v786
    %v788 = vpop.f32.mrb[0].mxu0
    %789 = vmatprep.mubr.bf16.mxu0 0
    %790 = vmatmul.mubr.bf16.gmra.mrb[0].mxu0 %v665
    %v791 = vpop.f32.mrb[0].mxu0
    %v792 = vadd.f32 %v599, %v791
    %v793 = vpop.f32.mrb[0].mxu0
    %v794 = vpop.f32.mrb[0].mxu0
    %v795 = vadd.f32 %v602, %v794
    %v796 = vpop.f32.mrb[0].mxu0
    %797 = vmatprep.mubr.bf16.mxu0 0
    %798 = vmatmul.mubr.bf16.gmra.mrb[0].mxu0 %v666
    %v799 = vpop.f32.mrb[0].mxu0
    %v800 = vadd.f32 %v607, %v799
    %v801 = vpop.f32.mrb[0].mxu0
    %v802 = vpop.f32.mrb[0].mxu0
    %v803 = vadd.f32 %v610, %v802
    %v804 = vpop.f32.mrb[0].mxu0
    %805 = vmatprep.mubr.bf16.mxu0 0
    %806 = vmatmul.mubr.bf16.gmra.mrb[0].mxu0 %v667
    %v807 = vpop.f32.mrb[0].mxu0
    %v808 = vadd.f32 %v615, %v807
    %v809 = vpop.f32.mrb[0].mxu0
    %v810 = vpop.f32.mrb[0].mxu0
    %v811 = vadd.f32 %v618, %v810
    %v812 = vpop.f32.mrb[0].mxu0
    %813 = vmatprep.mubr.bf16.mxu0 0
    %814 = vmatmul.mubr.bf16.gmra.mrb[0].mxu0 %v668
    %v815 = vpop.f32.mrb[0].mxu0
    %v816 = vadd.f32 %v623, %v815
    %v817 = vpop.f32.mrb[0].mxu0
    %v818 = vpop.f32.mrb[0].mxu0
    %v819 = vadd.f32 %v626, %v818
    %v820 = vpop.f32.mrb[0].mxu0
    %821 = vdwg.mxu0
    %v822 = vld [vmem:[%s5] sm:$0x1]
    %v824 = vlaneseq
    %v825 = vshrl.u32 %v824, 7
    %v826 = vsub.s32 0, %v825
    %v827 = vrot.slane %v822, %v826
    %v829 = vadd.f32 %v760, %v827
    %v830 = vadd.f32 %v763, %v827
    %v831 = vadd.f32 %v768, %v827
    %v832 = vadd.f32 %v771, %v827
    %v833 = vadd.f32 %v776, %v827
    %v834 = vadd.f32 %v779, %v827
    %v835 = vadd.f32 %v784, %v827
    %v836 = vadd.f32 %v787, %v827
    %v837 = vadd.f32 %v792, %v827
    %v838 = vadd.f32 %v795, %v827
    %v839 = vadd.f32 %v800, %v827
    %v840 = vadd.f32 %v803, %v827
    %v841 = vadd.f32 %v808, %v827
    %v842 = vadd.f32 %v811, %v827
    %v843 = vadd.f32 %v816, %v827
    %v844 = vadd.f32 %v819, %v827
    %845 = vst [vmem:[%s6] sm:$0xff] %v829
    %846 = vst [vmem:[%s6 + $0x8] sm:$0xff] %v830
    %847 = vst [vmem:[%s6 + $0x10] sm:$0xff] %v831
    %848 = vst [vmem:[%s6 + $0x18] sm:$0xff] %v832
    %849 = vst [vmem:[%s6 + $0x20] sm:$0xff] %v833
    %850 = vst [vmem:[%s6 + $0x28] sm:$0xff] %v834
    %851 = vst [vmem:[%s6 + $0x30] sm:$0xff] %v835
    %852 = vst [vmem:[%s6 + $0x38] sm:$0xff] %v836
    %853 = vst [vmem:[%s6 + $0x40] sm:$0xff] %v837
    %854 = vst [vmem:[%s6 + $0x48] sm:$0xff] %v838
    %855 = vst [vmem:[%s6 + $0x50] sm:$0xff] %v839
    %856 = vst [vmem:[%s6 + $0x58] sm:$0xff] %v840
    %857 = vst [vmem:[%s6 + $0x60] sm:$0xff] %v841
    %858 = vst [vmem:[%s6 + $0x68] sm:$0xff] %v842
    %859 = vst [vmem:[%s6 + $0x70] sm:$0xff] %v843
    %860 = vst [vmem:[%s6 + $0x78] sm:$0xff] %v844
  $region33: #{graphsage_forward.3} parent=0 // pred_fallthru
    _
  // Predicated region
  $region34: #{graphsage_forward.3} parent=0 // pred_check
    _
  $region35: #{graphsage_forward.3} parent=0 // pred_check_branch
    %862 = sbr.rel (0) target = $region37
  $region36: #{graphsage_forward.3} parent=0 // pred_region
    _
  $region37: #{graphsage_forward.3} parent=0 // pred_fallthru
    _
  // Predicated region
  $region38: #{graphsage_forward.3} parent=0 // pred_check
    _
  $region39: #{graphsage_forward.3} parent=0 // pred_check_branch
    %864 = sbr.rel (0) target = $region41
  $region40: #{graphsage_forward.3} parent=0 // pred_region
    _
  $region41: #{graphsage_forward.3} parent=0 // pred_fallthru
    _

// kernel: graphsage_forward.2
$region0: #{graphsage_forward.2}
  #allocation0 [shape = 'u32[]', space=smem, size = 0x4, offset = 0x4, fixed_abs, tag = 'smem constant byte address 0x4 - core index']
  #allocation1 [shape = 'u32[144,128]{1,0:T(1,128)}', space=vmem, size = 0x12000, scoped, tag = 'internal scratch']
  #allocation2 [shape = 'f32[128,32]{1,0:T(8,128)}', space=vmem, size = 0x10000, scoped, tag = 'scratch operand']
  %s0 = inlined_call_operand.vmem [shape: s8[128,128], index: 0, kind: input, shape index: {}]
  %s1 = inlined_call_operand.vmem [shape: bf16[128,32], index: 1, kind: input, shape index: {}, may-alias: {1,2}]
  %s2 = inlined_call_operand.vmem [shape: bf16[128,32], index: 2, kind: input, shape index: {}, may-alias: {1,2}]
  %s3 = inlined_call_operand.vmem [shape: bf16[32,128], index: 3, kind: input, shape index: {}]
  %s4 = inlined_call_operand.vmem [shape: bf16[32,128], index: 4, kind: input, shape index: {}]
  %s5 = inlined_call_operand.vmem [shape: f32[1,128], index: 5, kind: input, shape index: {}]
  %s6 = inlined_call_operand.vmem [shape: bf16[128,128], index: 6, kind: output, shape index: {}]
  %s7 = sld [smem:[#allocation0]]
  $region42: #{graphsage_forward.2} parent=0
    _
  %s9 = ssub.s32 1, %s7
  %s10 = scalar_select 0, %s9, %s7
  // Predicated region
  $region2: #{graphsage_forward.2} parent=0 // pred_check
    _
  $region3: #{graphsage_forward.2} parent=0 // pred_check_branch
    %12 = sbr.rel (0) target = $region5
  $region4: #{graphsage_forward.2} parent=0 // pred_region
    _
  $region5: #{graphsage_forward.2} parent=0 // pred_fallthru
    _
  // Predicated region
  $region6: #{graphsage_forward.2} parent=0 // pred_check
    _
  $region7: #{graphsage_forward.2} parent=0 // pred_check_branch
    %14 = sbr.rel (0) target = $region9
  $region8: #{graphsage_forward.2} parent=0 // pred_region
    _
  $region9: #{graphsage_forward.2} parent=0 // pred_fallthru
    _
  // Predicated region
  $region10: #{graphsage_forward.2} parent=0 // pred_check
    _
  $region11: #{graphsage_forward.2} parent=0 // pred_check_branch
    %16 = sbr.rel (0) target = $region13
  $region12: #{graphsage_forward.2} parent=0 // pred_region
    _
  $region13: #{graphsage_forward.2} parent=0 // pred_fallthru
    _
  // Predicated region
  $region14: #{graphsage_forward.2} parent=0 // pred_check
    _
  $region15: #{graphsage_forward.2} parent=0 // pred_check_branch
    %18 = sbr.rel (0) target = $region17
  $region16: #{graphsage_forward.2} parent=0 // pred_region
    _
  $region17: #{graphsage_forward.2} parent=0 // pred_fallthru
    _
  // Predicated region
  $region18: #{graphsage_forward.2} parent=0 // pred_check
    _
  $region19: #{graphsage_forward.2} parent=0 // pred_check_branch
    %20 = sbr.rel (0) target = $region21
  $region20: #{graphsage_forward.2} parent=0 // pred_region
    _
  $region21: #{graphsage_forward.2} parent=0 // pred_fallthru
    _
  // Predicated region
  $region22: #{graphsage_forward.2} parent=0 // pred_check
    _
  $region23: #{graphsage_forward.2} parent=0 // pred_check_branch
    %22 = sbr.rel (0) target = $region25
  $region24: #{graphsage_forward.2} parent=0 // pred_region
    _
  $region25: #{graphsage_forward.2} parent=0 // pred_fallthru
    _
  %p24 = scmp.eq.s32.totalorder 0, 0
  // Predicated region
  $region26: #{graphsage_forward.2} parent=0 // pred_check
    %p25 = pneg %p24
  $region27: #{graphsage_forward.2} parent=0 // pred_check_branch
    %27 = sbr.rel (%p25) target = $region29
  $region28: #{graphsage_forward.2} parent=0 // pred_region
    %vm28 = vcmask 261120
    %29 = vst.msk [vmem:[#allocation2] sm:$0xff] %vm28, 0.0
    %30 = vst.msk [vmem:[#allocation2 + $0x8] sm:$0xff] %vm28, 0.0
    %31 = vst.msk [vmem:[#allocation2 + $0x10] sm:$0xff] %vm28, 0.0
    %32 = vst.msk [vmem:[#allocation2 + $0x18] sm:$0xff] %vm28, 0.0
    %33 = vst.msk [vmem:[#allocation2 + $0x20] sm:$0xff] %vm28, 0.0
    %34 = vst.msk [vmem:[#allocation2 + $0x28] sm:$0xff] %vm28, 0.0
    %35 = vst.msk [vmem:[#allocation2 + $0x30] sm:$0xff] %vm28, 0.0
    %36 = vst.msk [vmem:[#allocation2 + $0x38] sm:$0xff] %vm28, 0.0
    %37 = vst.msk [vmem:[#allocation2 + $0x40] sm:$0xff] %vm28, 0.0
    %38 = vst.msk [vmem:[#allocation2 + $0x48] sm:$0xff] %vm28, 0.0
    %39 = vst.msk [vmem:[#allocation2 + $0x50] sm:$0xff] %vm28, 0.0
    %40 = vst.msk [vmem:[#allocation2 + $0x58] sm:$0xff] %vm28, 0.0
    %41 = vst.msk [vmem:[#allocation2 + $0x60] sm:$0xff] %vm28, 0.0
    %42 = vst.msk [vmem:[#allocation2 + $0x68] sm:$0xff] %vm28, 0.0
    %43 = vst.msk [vmem:[#allocation2 + $0x70] sm:$0xff] %vm28, 0.0
    %44 = vst.msk [vmem:[#allocation2 + $0x78] sm:$0xff] %vm28, 0.0
  $region29: #{graphsage_forward.2} parent=0 // pred_fallthru
    _
  %v45 = vld [vmem:[%s0] sm:$0xff]
  %v46 = vld [vmem:[%s0 + $0x8] sm:$0xff]
  %v47 = vld [vmem:[%s0 + $0x10] sm:$0xff]
  %v48 = vld [vmem:[%s0 + $0x18] sm:$0xff]
  %v49 = vunpack.c.l.s8.bf16 %v45
  %v50 = vunpack.c.h.s8.bf16 %v45
  %v51 = vunpack.c.l.s8.bf16 %v46
  %v52 = vunpack.c.h.s8.bf16 %v46
  %v53 = vunpack.c.l.s8.bf16 %v47
  %v54 = vunpack.c.h.s8.bf16 %v47
  %v55 = vunpack.c.l.s8.bf16 %v48
  %v56 = vunpack.c.h.s8.bf16 %v48
  %v57 = vld [vmem:[#allocation2] sm:$0xff]
  %v58 = vld [vmem:[#allocation2 + $0x8] sm:$0xff]
  %v59 = vld [vmem:[#allocation2 + $0x10] sm:$0xff]
  %v60 = vld [vmem:[#allocation2 + $0x18] sm:$0xff]
  %v61 = vld [vmem:[#allocation2 + $0x20] sm:$0xff]
  %v62 = vld [vmem:[#allocation2 + $0x28] sm:$0xff]
  %v63 = vld [vmem:[#allocation2 + $0x30] sm:$0xff]
  %v64 = vld [vmem:[#allocation2 + $0x38] sm:$0xff]
  %v65 = vld [vmem:[#allocation2 + $0x40] sm:$0xff]
  %v66 = vld [vmem:[#allocation2 + $0x48] sm:$0xff]
  %v67 = vld [vmem:[#allocation2 + $0x50] sm:$0xff]
  %v68 = vld [vmem:[#allocation2 + $0x58] sm:$0xff]
  %v69 = vld [vmem:[#allocation2 + $0x60] sm:$0xff]
  %v70 = vld [vmem:[#allocation2 + $0x68] sm:$0xff]
  %v71 = vld [vmem:[#allocation2 + $0x70] sm:$0xff]
  %v72 = vld [vmem:[#allocation2 + $0x78] sm:$0xff]
  %v73 = vld [vmem:[%s1] sm:$0xf]
  %v74 = vld [vmem:[%s1 + $0x4] sm:$0xf]
  %v75 = vld [vmem:[%s1 + $0x8] sm:$0xf]
  %v76 = vld [vmem:[%s1 + $0xc] sm:$0xf]
  %v77 = vld [vmem:[%s1 + $0x10] sm:$0xf]
  %v78 = vld [vmem:[%s1 + $0x14] sm:$0xf]
  %v79 = vld [vmem:[%s1 + $0x18] sm:$0xf]
  %v80 = vld [vmem:[%s1 + $0x1c] sm:$0xf]
  %v81 = vld [vmem:[%s1 + $0x20] sm:$0xf]
  %v82 = vld [vmem:[%s1 + $0x24] sm:$0xf]
  %v83 = vld [vmem:[%s1 + $0x28] sm:$0xf]
  %v84 = vld [vmem:[%s1 + $0x2c] sm:$0xf]
  %v85 = vld [vmem:[%s1 + $0x30] sm:$0xf]
  %v86 = vld [vmem:[%s1 + $0x34] sm:$0xf]
  %v87 = vld [vmem:[%s1 + $0x38] sm:$0xf]
  %v88 = vld [vmem:[%s1 + $0x3c] sm:$0xf]
  %v105 = vunpack.c.l.b16 %v73
  %v106 = vunpack.c.l.b16 %v74
  %v107 = vunpack.c.l.b16 %v75
  %v108 = vunpack.c.l.b16 %v76
  %v109 = vunpack.c.l.b16 %v77
  %v110 = vunpack.c.l.b16 %v78
  %v111 = vunpack.c.l.b16 %v79
  %v112 = vunpack.c.l.b16 %v80
  %v113 = vunpack.c.l.b16 %v81
  %v114 = vunpack.c.l.b16 %v82
  %v115 = vunpack.c.l.b16 %v83
  %v116 = vunpack.c.l.b16 %v84
  %v117 = vunpack.c.l.b16 %v85
  %v118 = vunpack.c.l.b16 %v86
  %v119 = vunpack.c.l.b16 %v87
  %v120 = vunpack.c.l.b16 %v88
  %v121 = vpack.c.b16 %v106, %v105
  %v122 = vpack.c.b16 %v108, %v107
  %v123 = vpack.c.b16 %v110, %v109
  %v124 = vpack.c.b16 %v112, %v111
  %v125 = vpack.c.b16 %v114, %v113
  %v126 = vpack.c.b16 %v116, %v115
  %v127 = vpack.c.b16 %v118, %v117
  %v128 = vpack.c.b16 %v120, %v119
  %137 = vmatprep.subr.bf16.mxu0 0
  %138 = vmatpush1.bf16.msra.mxu0 %v121
  %139 = vmatprep.subr.bf16.mxu0 0
  %140 = vmatpush1.bf16.msra.mxu0 %v122
  %141 = vmatprep.subr.bf16.mxu0 0
  %142 = vmatpush1.bf16.msra.mxu0 %v123
  %143 = vmatprep.subr.bf16.mxu0 0
  %144 = vmatpush1.bf16.msra.mxu0 %v124
  %145 = vmatprep.subr.bf16.mxu0 0
  %146 = vmatpush1.bf16.msra.mxu0 %v125
  %147 = vmatprep.subr.bf16.mxu0 0
  %148 = vmatpush1.bf16.msra.mxu0 %v126
  %149 = vmatprep.subr.bf16.mxu0 0
  %150 = vmatpush1.bf16.msra.mxu0 %v127
  %151 = vmatprep.subr.bf16.mxu0 0
  %152 = vmatpush1.bf16.msra.mxu0 %v128
  %153 = vmatprep.subr.bf16.mxu0 0
  %154 = vmatpush1.bf16.msra.mxu0 0
  %155 = vmatprep.subr.bf16.mxu0 0
  %156 = vmatpush1.bf16.msra.mxu0 0
  %157 = vmatprep.subr.bf16.mxu0 0
  %158 = vmatpush1.bf16.msra.mxu0 0
  %159 = vmatprep.subr.bf16.mxu0 0
  %160 = vmatpush1.bf16.msra.mxu0 0
  %161 = vmatprep.subr.bf16.mxu0 0
  %162 = vmatpush1.bf16.msra.mxu0 0
  %163 = vmatprep.subr.bf16.mxu0 0
  %164 = vmatpush1.bf16.msra.mxu0 0
  %165 = vmatprep.subr.bf16.mxu0 0
  %166 = vmatpush1.bf16.msra.mxu0 0
  %167 = vmatprep.subr.bf16.mxu0 0
  %168 = vmatpush1.bf16.msra.mxu0 0
  %169 = vmatprep.mubr.bf16.mxu0 0
  %170 = vmatmul.mubr.bf16.gmra.mrb[0].mxu0 %v49
  %v171 = vpop.f32.mrb[0].mxu0
  %v172 = vadd.f32 0.0, %v171
  %v173 = vpop.f32.mrb[0].mxu0
  %v174 = vpop.f32.mrb[0].mxu0
  %v175 = vadd.f32 0.0, %v174
  %v176 = vpop.f32.mrb[0].mxu0
  %177 = vmatprep.mubr.bf16.mxu0 0
  %178 = vmatmul.mubr.bf16.gmra.mrb[0].mxu0 %v50
  %v179 = vpop.f32.mrb[0].mxu0
  %v180 = vadd.f32 0.0, %v179
  %v181 = vpop.f32.mrb[0].mxu0
  %v182 = vpop.f32.mrb[0].mxu0
  %v183 = vadd.f32 0.0, %v182
  %v184 = vpop.f32.mrb[0].mxu0
  %185 = vmatprep.mubr.bf16.mxu0 0
  %186 = vmatmul.mubr.bf16.gmra.mrb[0].mxu0 %v51
  %v187 = vpop.f32.mrb[0].mxu0
  %v188 = vadd.f32 0.0, %v187
  %v189 = vpop.f32.mrb[0].mxu0
  %v190 = vpop.f32.mrb[0].mxu0
  %v191 = vadd.f32 0.0, %v190
  %v192 = vpop.f32.mrb[0].mxu0
  %193 = vmatprep.mubr.bf16.mxu0 0
  %194 = vmatmul.mubr.bf16.gmra.mrb[0].mxu0 %v52
  %v195 = vpop.f32.mrb[0].mxu0
  %v196 = vadd.f32 0.0, %v195
  %v197 = vpop.f32.mrb[0].mxu0
  %v198 = vpop.f32.mrb[0].mxu0
  %v199 = vadd.f32 0.0, %v198
  %v200 = vpop.f32.mrb[0].mxu0
  %201 = vmatprep.mubr.bf16.mxu0 0
  %202 = vmatmul.mubr.bf16.gmra.mrb[0].mxu0 %v53
  %v203 = vpop.f32.mrb[0].mxu0
  %v204 = vadd.f32 0.0, %v203
  %v205 = vpop.f32.mrb[0].mxu0
  %v206 = vpop.f32.mrb[0].mxu0
  %v207 = vadd.f32 0.0, %v206
  %v208 = vpop.f32.mrb[0].mxu0
  %209 = vmatprep.mubr.bf16.mxu0 0
  %210 = vmatmul.mubr.bf16.gmra.mrb[0].mxu0 %v54
  %v211 = vpop.f32.mrb[0].mxu0
  %v212 = vadd.f32 0.0, %v211
  %v213 = vpop.f32.mrb[0].mxu0
  %v214 = vpop.f32.mrb[0].mxu0
  %v215 = vadd.f32 0.0, %v214
  %v216 = vpop.f32.mrb[0].mxu0
  %217 = vmatprep.mubr.bf16.mxu0 0
  %218 = vmatmul.mubr.bf16.gmra.mrb[0].mxu0 %v55
  %v219 = vpop.f32.mrb[0].mxu0
  %v220 = vadd.f32 0.0, %v219
  %v221 = vpop.f32.mrb[0].mxu0
  %v222 = vpop.f32.mrb[0].mxu0
  %v223 = vadd.f32 0.0, %v222
  %v224 = vpop.f32.mrb[0].mxu0
  %225 = vmatprep.mubr.bf16.mxu0 0
  %226 = vmatmul.mubr.bf16.gmra.mrb[0].mxu0 %v56
  %v227 = vpop.f32.mrb[0].mxu0
  %v228 = vadd.f32 0.0, %v227
  %v229 = vpop.f32.mrb[0].mxu0
  %v230 = vpop.f32.mrb[0].mxu0
  %v231 = vadd.f32 0.0, %v230
  %v232 = vpop.f32.mrb[0].mxu0
  %233 = vdwg.mxu0
  %v234 = vadd.f32 %v57, %v172
  %v235 = vadd.f32 %v58, %v175
  %v236 = vadd.f32 %v59, %v180
  %v237 = vadd.f32 %v60, %v183
  %v238 = vadd.f32 %v61, %v188
  %v239 = vadd.f32 %v62, %v191
  %v240 = vadd.f32 %v63, %v196
  %v241 = vadd.f32 %v64, %v199
  %v242 = vadd.f32 %v65, %v204
  %v243 = vadd.f32 %v66, %v207
  %v244 = vadd.f32 %v67, %v212
  %v245 = vadd.f32 %v68, %v215
  %v246 = vadd.f32 %v69, %v220
  %v247 = vadd.f32 %v70, %v223
  %v248 = vadd.f32 %v71, %v228
  %v249 = vadd.f32 %v72, %v231
  %vm250 = vcmask 261120
  %251 = vst.msk [vmem:[#allocation2] sm:$0xff] %vm250, %v234
  %252 = vst.msk [vmem:[#allocation2 + $0x8] sm:$0xff] %vm250, %v235
  %253 = vst.msk [vmem:[#allocation2 + $0x10] sm:$0xff] %vm250, %v236
  %254 = vst.msk [vmem:[#allocation2 + $0x18] sm:$0xff] %vm250, %v237
  %255 = vst.msk [vmem:[#allocation2 + $0x20] sm:$0xff] %vm250, %v238
  %256 = vst.msk [vmem:[#allocation2 + $0x28] sm:$0xff] %vm250, %v239
  %257 = vst.msk [vmem:[#allocation2 + $0x30] sm:$0xff] %vm250, %v240
  %258 = vst.msk [vmem:[#allocation2 + $0x38] sm:$0xff] %vm250, %v241
  %259 = vst.msk [vmem:[#allocation2 + $0x40] sm:$0xff] %vm250, %v242
  %260 = vst.msk [vmem:[#allocation2 + $0x48] sm:$0xff] %vm250, %v243
  %261 = vst.msk [vmem:[#allocation2 + $0x50] sm:$0xff] %vm250, %v244
  %262 = vst.msk [vmem:[#allocation2 + $0x58] sm:$0xff] %vm250, %v245
  %263 = vst.msk [vmem:[#allocation2 + $0x60] sm:$0xff] %vm250, %v246
  %264 = vst.msk [vmem:[#allocation2 + $0x68] sm:$0xff] %vm250, %v247
  %265 = vst.msk [vmem:[#allocation2 + $0x70] sm:$0xff] %vm250, %v248
  %266 = vst.msk [vmem:[#allocation2 + $0x78] sm:$0xff] %vm250, %v249
  // Predicated region
  $region30: #{graphsage_forward.2} parent=0 // pred_check
    %p267 = pneg %p24
  $region31: #{graphsage_forward.2} parent=0 // pred_check_branch
    %269 = sbr.rel (%p267) target = $region33
  $region32: #{graphsage_forward.2} parent=0 // pred_region
    %v270 = vld [vmem:[#allocation2] sm:$0xff]
    %v271 = vld [vmem:[#allocation2 + $0x8] sm:$0xff]
    %v272 = vld [vmem:[#allocation2 + $0x10] sm:$0xff]
    %v273 = vld [vmem:[#allocation2 + $0x18] sm:$0xff]
    %v274 = vld [vmem:[#allocation2 + $0x20] sm:$0xff]
    %v275 = vld [vmem:[#allocation2 + $0x28] sm:$0xff]
    %v276 = vld [vmem:[#allocation2 + $0x30] sm:$0xff]
    %v277 = vld [vmem:[#allocation2 + $0x38] sm:$0xff]
    %v278 = vld [vmem:[#allocation2 + $0x40] sm:$0xff]
    %v279 = vld [vmem:[#allocation2 + $0x48] sm:$0xff]
    %v280 = vld [vmem:[#allocation2 + $0x50] sm:$0xff]
    %v281 = vld [vmem:[#allocation2 + $0x58] sm:$0xff]
    %v282 = vld [vmem:[#allocation2 + $0x60] sm:$0xff]
    %v283 = vld [vmem:[#allocation2 + $0x68] sm:$0xff]
    %v284 = vld [vmem:[#allocation2 + $0x70] sm:$0xff]
    %v285 = vld [vmem:[#allocation2 + $0x78] sm:$0xff]
    %v286 = vmax.f32 %v270, 1.0
    %v287 = vmax.f32 %v271, 1.0
    %v288 = vmax.f32 %v272, 1.0
    %v289 = vmax.f32 %v273, 1.0
    %v290 = vmax.f32 %v274, 1.0
    %v291 = vmax.f32 %v275, 1.0
    %v292 = vmax.f32 %v276, 1.0
    %v293 = vmax.f32 %v277, 1.0
    %v294 = vmax.f32 %v278, 1.0
    %v295 = vmax.f32 %v279, 1.0
    %v296 = vmax.f32 %v280, 1.0
    %v297 = vmax.f32 %v281, 1.0
    %v298 = vmax.f32 %v282, 1.0
    %v299 = vmax.f32 %v283, 1.0
    %v300 = vmax.f32 %v284, 1.0
    %v301 = vmax.f32 %v285, 1.0
    %v302 = vrcp.pop %v286
    %v303 = vmul.f32 1.0, %v302
    %v304 = vrcp.pop %v287
    %v305 = vmul.f32 1.0, %v304
    %v306 = vrcp.pop %v288
    %v307 = vmul.f32 1.0, %v306
    %v308 = vrcp.pop %v289
    %v309 = vmul.f32 1.0, %v308
    %v310 = vrcp.pop %v290
    %v311 = vmul.f32 1.0, %v310
    %v312 = vrcp.pop %v291
    %v313 = vmul.f32 1.0, %v312
    %v314 = vrcp.pop %v292
    %v315 = vmul.f32 1.0, %v314
    %v316 = vrcp.pop %v293
    %v317 = vmul.f32 1.0, %v316
    %v318 = vrcp.pop %v294
    %v319 = vmul.f32 1.0, %v318
    %v320 = vrcp.pop %v295
    %v321 = vmul.f32 1.0, %v320
    %v322 = vrcp.pop %v296
    %v323 = vmul.f32 1.0, %v322
    %v324 = vrcp.pop %v297
    %v325 = vmul.f32 1.0, %v324
    %v326 = vrcp.pop %v298
    %v327 = vmul.f32 1.0, %v326
    %v328 = vrcp.pop %v299
    %v329 = vmul.f32 1.0, %v328
    %v330 = vrcp.pop %v300
    %v331 = vmul.f32 1.0, %v330
    %v332 = vrcp.pop %v301
    %v333 = vmul.f32 1.0, %v332
    %335 = vset.pattern.permute.xlu0 16
    %336 = vperm.xlu0 %335, %v303
    %v337 = vpop.permute.xlu0 %336
    %340 = vset.pattern.permute.xlu0 16
    %341 = vperm.xlu0 %340, %v305
    %v342 = vpop.permute.xlu0 %341
    %345 = vset.pattern.permute.xlu0 16
    %346 = vperm.xlu0 %345, %v307
    %v347 = vpop.permute.xlu0 %346
    %350 = vset.pattern.permute.xlu0 16
    %351 = vperm.xlu0 %350, %v309
    %v352 = vpop.permute.xlu0 %351
    %355 = vset.pattern.permute.xlu0 16
    %356 = vperm.xlu0 %355, %v311
    %v357 = vpop.permute.xlu0 %356
    %360 = vset.pattern.permute.xlu0 16
    %361 = vperm.xlu0 %360, %v313
    %v362 = vpop.permute.xlu0 %361
    %365 = vset.pattern.permute.xlu0 16
    %366 = vperm.xlu0 %365, %v315
    %v367 = vpop.permute.xlu0 %366
    %370 = vset.pattern.permute.xlu0 16
    %371 = vperm.xlu0 %370, %v317
    %v372 = vpop.permute.xlu0 %371
    %375 = vset.pattern.permute.xlu0 16
    %376 = vperm.xlu0 %375, %v319
    %v377 = vpop.permute.xlu0 %376
    %380 = vset.pattern.permute.xlu0 16
    %381 = vperm.xlu0 %380, %v321
    %v382 = vpop.permute.xlu0 %381
    %385 = vset.pattern.permute.xlu0 16
    %386 = vperm.xlu0 %385, %v323
    %v387 = vpop.permute.xlu0 %386
    %390 = vset.pattern.permute.xlu0 16
    %391 = vperm.xlu0 %390, %v325
    %v392 = vpop.permute.xlu0 %391
    %395 = vset.pattern.permute.xlu0 16
    %396 = vperm.xlu0 %395, %v327
    %v397 = vpop.permute.xlu0 %396
    %400 = vset.pattern.permute.xlu0 16
    %401 = vperm.xlu0 %400, %v329
    %v402 = vpop.permute.xlu0 %401
    %405 = vset.pattern.permute.xlu0 16
    %406 = vperm.xlu0 %405, %v331
    %v407 = vpop.permute.xlu0 %406
    %410 = vset.pattern.permute.xlu0 16
    %411 = vperm.xlu0 %410, %v333
    %v412 = vpop.permute.xlu0 %411
    %v414 = vmul.f32 %v270, %v337
    %v415 = vmul.f32 %v271, %v342
    %v416 = vmul.f32 %v272, %v347
    %v417 = vmul.f32 %v273, %v352
    %v418 = vmul.f32 %v274, %v357
    %v419 = vmul.f32 %v275, %v362
    %v420 = vmul.f32 %v276, %v367
    %v421 = vmul.f32 %v277, %v372
    %v422 = vmul.f32 %v278, %v377
    %v423 = vmul.f32 %v279, %v382
    %v424 = vmul.f32 %v280, %v387
    %v425 = vmul.f32 %v281, %v392
    %v426 = vmul.f32 %v282, %v397
    %v427 = vmul.f32 %v283, %v402
    %v428 = vmul.f32 %v284, %v407
    %v429 = vmul.f32 %v285, %v412
    %v430 = vpack.c.bf16 %v415, %v414
    %v431 = vpack.c.bf16 %v417, %v416
    %v432 = vpack.c.bf16 %v419, %v418
    %v433 = vpack.c.bf16 %v421, %v420
    %v434 = vpack.c.bf16 %v423, %v422
    %v435 = vpack.c.bf16 %v425, %v424
    %v436 = vpack.c.bf16 %v427, %v426
    %v437 = vpack.c.bf16 %v429, %v428
    %v438 = vld [vmem:[%s2] sm:$0xf]
    %v439 = vld [vmem:[%s2 + $0x4] sm:$0xf]
    %v440 = vld [vmem:[%s2 + $0x8] sm:$0xf]
    %v441 = vld [vmem:[%s2 + $0xc] sm:$0xf]
    %v442 = vld [vmem:[%s2 + $0x10] sm:$0xf]
    %v443 = vld [vmem:[%s2 + $0x14] sm:$0xf]
    %v444 = vld [vmem:[%s2 + $0x18] sm:$0xf]
    %v445 = vld [vmem:[%s2 + $0x1c] sm:$0xf]
    %v446 = vld [vmem:[%s2 + $0x20] sm:$0xf]
    %v447 = vld [vmem:[%s2 + $0x24] sm:$0xf]
    %v448 = vld [vmem:[%s2 + $0x28] sm:$0xf]
    %v449 = vld [vmem:[%s2 + $0x2c] sm:$0xf]
    %v450 = vld [vmem:[%s2 + $0x30] sm:$0xf]
    %v451 = vld [vmem:[%s2 + $0x34] sm:$0xf]
    %v452 = vld [vmem:[%s2 + $0x38] sm:$0xf]
    %v453 = vld [vmem:[%s2 + $0x3c] sm:$0xf]
    %v454 = vld [vmem:[%s3] sm:$0xf]
    %v455 = vld [vmem:[%s3 + $0x4] sm:$0xf]
    %v456 = vld [vmem:[%s3 + $0x8] sm:$0xf]
    %v457 = vld [vmem:[%s3 + $0xc] sm:$0xf]
    %v458 = vld [vmem:[%s4] sm:$0xf]
    %v459 = vld [vmem:[%s4 + $0x4] sm:$0xf]
    %v460 = vld [vmem:[%s4 + $0x8] sm:$0xf]
    %v461 = vld [vmem:[%s4 + $0xc] sm:$0xf]
    %v466 = vunpack.c.l.b16 %v458
    %v467 = vunpack.c.l.b16 %v459
    %v468 = vunpack.c.l.b16 %v460
    %v469 = vunpack.c.l.b16 %v461
    %v470 = vpack.c.b16 %v467, %v466
    %v471 = vpack.c.b16 %v469, %v468
    %v475 = vsel %vm250, %v430, 0
    %v478 = vsel %vm250, %v431, 0
    %v481 = vsel %vm250, %v432, 0
    %v484 = vsel %vm250, %v433, 0
    %v487 = vsel %vm250, %v434, 0
    %v490 = vsel %vm250, %v435, 0
    %v493 = vsel %vm250, %v436, 0
    %v496 = vsel %vm250, %v437, 0
    %498 = vmatprep.subr.bf16.mxu0 0
    %499 = vmatpush1.bf16.msra.mxu0 %v470
    %500 = vmatprep.subr.bf16.mxu0 0
    %501 = vmatpush1.bf16.msra.mxu0 %v471
    %502 = vmatprep.subr.bf16.mxu0 0
    %503 = vmatpush1.bf16.msra.mxu0 0
    %504 = vmatprep.subr.bf16.mxu0 0
    %505 = vmatpush1.bf16.msra.mxu0 0
    %506 = vmatprep.subr.bf16.mxu0 0
    %507 = vmatpush1.bf16.msra.mxu0 0
    %508 = vmatprep.subr.bf16.mxu0 0
    %509 = vmatpush1.bf16.msra.mxu0 0
    %510 = vmatprep.subr.bf16.mxu0 0
    %511 = vmatpush1.bf16.msra.mxu0 0
    %512 = vmatprep.subr.bf16.mxu0 0
    %513 = vmatpush1.bf16.msra.mxu0 0
    %514 = vmatprep.subr.bf16.mxu0 0
    %515 = vmatpush1.bf16.msra.mxu0 0
    %516 = vmatprep.subr.bf16.mxu0 0
    %517 = vmatpush1.bf16.msra.mxu0 0
    %518 = vmatprep.subr.bf16.mxu0 0
    %519 = vmatpush1.bf16.msra.mxu0 0
    %520 = vmatprep.subr.bf16.mxu0 0
    %521 = vmatpush1.bf16.msra.mxu0 0
    %522 = vmatprep.subr.bf16.mxu0 0
    %523 = vmatpush1.bf16.msra.mxu0 0
    %524 = vmatprep.subr.bf16.mxu0 0
    %525 = vmatpush1.bf16.msra.mxu0 0
    %526 = vmatprep.subr.bf16.mxu0 0
    %527 = vmatpush1.bf16.msra.mxu0 0
    %528 = vmatprep.subr.bf16.mxu0 0
    %529 = vmatpush1.bf16.msra.mxu0 0
    %530 = vmatprep.mubr.bf16.mxu0 0
    %531 = vmatmul.mubr.bf16.gmra.mrb[0].mxu0 %v475
    %v532 = vpop.f32.mrb[0].mxu0
    %v533 = vadd.f32 0.0, %v532
    %v534 = vpop.f32.mrb[0].mxu0
    %v535 = vpop.f32.mrb[0].mxu0
    %v536 = vadd.f32 0.0, %v535
    %v537 = vpop.f32.mrb[0].mxu0
    %538 = vmatprep.mubr.bf16.mxu0 0
    %539 = vmatmul.mubr.bf16.gmra.mrb[0].mxu0 %v478
    %v540 = vpop.f32.mrb[0].mxu0
    %v541 = vadd.f32 0.0, %v540
    %v542 = vpop.f32.mrb[0].mxu0
    %v543 = vpop.f32.mrb[0].mxu0
    %v544 = vadd.f32 0.0, %v543
    %v545 = vpop.f32.mrb[0].mxu0
    %546 = vmatprep.mubr.bf16.mxu0 0
    %547 = vmatmul.mubr.bf16.gmra.mrb[0].mxu0 %v481
    %v548 = vpop.f32.mrb[0].mxu0
    %v549 = vadd.f32 0.0, %v548
    %v550 = vpop.f32.mrb[0].mxu0
    %v551 = vpop.f32.mrb[0].mxu0
    %v552 = vadd.f32 0.0, %v551
    %v553 = vpop.f32.mrb[0].mxu0
    %554 = vmatprep.mubr.bf16.mxu0 0
    %555 = vmatmul.mubr.bf16.gmra.mrb[0].mxu0 %v484
    %v556 = vpop.f32.mrb[0].mxu0
    %v557 = vadd.f32 0.0, %v556
    %v558 = vpop.f32.mrb[0].mxu0
    %v559 = vpop.f32.mrb[0].mxu0
    %v560 = vadd.f32 0.0, %v559
    %v561 = vpop.f32.mrb[0].mxu0
    %562 = vmatprep.mubr.bf16.mxu0 0
    %563 = vmatmul.mubr.bf16.gmra.mrb[0].mxu0 %v487
    %v564 = vpop.f32.mrb[0].mxu0
    %v565 = vadd.f32 0.0, %v564
    %v566 = vpop.f32.mrb[0].mxu0
    %v567 = vpop.f32.mrb[0].mxu0
    %v568 = vadd.f32 0.0, %v567
    %v569 = vpop.f32.mrb[0].mxu0
    %570 = vmatprep.mubr.bf16.mxu0 0
    %571 = vmatmul.mubr.bf16.gmra.mrb[0].mxu0 %v490
    %v572 = vpop.f32.mrb[0].mxu0
    %v573 = vadd.f32 0.0, %v572
    %v574 = vpop.f32.mrb[0].mxu0
    %v575 = vpop.f32.mrb[0].mxu0
    %v576 = vadd.f32 0.0, %v575
    %v577 = vpop.f32.mrb[0].mxu0
    %578 = vmatprep.mubr.bf16.mxu0 0
    %579 = vmatmul.mubr.bf16.gmra.mrb[0].mxu0 %v493
    %v580 = vpop.f32.mrb[0].mxu0
    %v581 = vadd.f32 0.0, %v580
    %v582 = vpop.f32.mrb[0].mxu0
    %v583 = vpop.f32.mrb[0].mxu0
    %v584 = vadd.f32 0.0, %v583
    %v585 = vpop.f32.mrb[0].mxu0
    %586 = vmatprep.mubr.bf16.mxu0 0
    %587 = vmatmul.mubr.bf16.gmra.mrb[0].mxu0 %v496
    %v588 = vpop.f32.mrb[0].mxu0
    %v589 = vadd.f32 0.0, %v588
    %v590 = vpop.f32.mrb[0].mxu0
    %v591 = vpop.f32.mrb[0].mxu0
    %v592 = vadd.f32 0.0, %v591
    %v593 = vpop.f32.mrb[0].mxu0
    %594 = vdwg.mxu0
    %v611 = vunpack.c.l.b16 %v438
    %v612 = vunpack.c.l.b16 %v439
    %v613 = vunpack.c.l.b16 %v440
    %v614 = vunpack.c.l.b16 %v441
    %v615 = vunpack.c.l.b16 %v442
    %v616 = vunpack.c.l.b16 %v443
    %v617 = vunpack.c.l.b16 %v444
    %v618 = vunpack.c.l.b16 %v445
    %v619 = vunpack.c.l.b16 %v446
    %v620 = vunpack.c.l.b16 %v447
    %v621 = vunpack.c.l.b16 %v448
    %v622 = vunpack.c.l.b16 %v449
    %v623 = vunpack.c.l.b16 %v450
    %v624 = vunpack.c.l.b16 %v451
    %v625 = vunpack.c.l.b16 %v452
    %v626 = vunpack.c.l.b16 %v453
    %v627 = vpack.c.b16 %v612, %v611
    %v628 = vpack.c.b16 %v614, %v613
    %v629 = vpack.c.b16 %v616, %v615
    %v630 = vpack.c.b16 %v618, %v617
    %v631 = vpack.c.b16 %v620, %v619
    %v632 = vpack.c.b16 %v622, %v621
    %v633 = vpack.c.b16 %v624, %v623
    %v634 = vpack.c.b16 %v626, %v625
    %v639 = vunpack.c.l.b16 %v454
    %v640 = vunpack.c.l.b16 %v455
    %v641 = vunpack.c.l.b16 %v456
    %v642 = vunpack.c.l.b16 %v457
    %v643 = vpack.c.b16 %v640, %v639
    %v644 = vpack.c.b16 %v642, %v641
    %v648 = vsel %vm250, %v627, 0
    %v651 = vsel %vm250, %v628, 0
    %v654 = vsel %vm250, %v629, 0
    %v657 = vsel %vm250, %v630, 0
    %v660 = vsel %vm250, %v631, 0
    %v663 = vsel %vm250, %v632, 0
    %v666 = vsel %vm250, %v633, 0
    %v669 = vsel %vm250, %v634, 0
    %671 = vmatprep.subr.bf16.mxu0 0
    %672 = vmatpush1.bf16.msra.mxu0 %v643
    %673 = vmatprep.subr.bf16.mxu0 0
    %674 = vmatpush1.bf16.msra.mxu0 %v644
    %675 = vmatprep.subr.bf16.mxu0 0
    %676 = vmatpush1.bf16.msra.mxu0 0
    %677 = vmatprep.subr.bf16.mxu0 0
    %678 = vmatpush1.bf16.msra.mxu0 0
    %679 = vmatprep.subr.bf16.mxu0 0
    %680 = vmatpush1.bf16.msra.mxu0 0
    %681 = vmatprep.subr.bf16.mxu0 0
    %682 = vmatpush1.bf16.msra.mxu0 0
    %683 = vmatprep.subr.bf16.mxu0 0
    %684 = vmatpush1.bf16.msra.mxu0 0
    %685 = vmatprep.subr.bf16.mxu0 0
    %686 = vmatpush1.bf16.msra.mxu0 0
    %687 = vmatprep.subr.bf16.mxu0 0
    %688 = vmatpush1.bf16.msra.mxu0 0
    %689 = vmatprep.subr.bf16.mxu0 0
    %690 = vmatpush1.bf16.msra.mxu0 0
    %691 = vmatprep.subr.bf16.mxu0 0
    %692 = vmatpush1.bf16.msra.mxu0 0
    %693 = vmatprep.subr.bf16.mxu0 0
    %694 = vmatpush1.bf16.msra.mxu0 0
    %695 = vmatprep.subr.bf16.mxu0 0
    %696 = vmatpush1.bf16.msra.mxu0 0
    %697 = vmatprep.subr.bf16.mxu0 0
    %698 = vmatpush1.bf16.msra.mxu0 0
    %699 = vmatprep.subr.bf16.mxu0 0
    %700 = vmatpush1.bf16.msra.mxu0 0
    %701 = vmatprep.subr.bf16.mxu0 0
    %702 = vmatpush1.bf16.msra.mxu0 0
    %703 = vmatprep.mubr.bf16.mxu0 0
    %704 = vmatmul.mubr.bf16.gmra.mrb[0].mxu0 %v648
    %v705 = vpop.f32.mrb[0].mxu0
    %v706 = vadd.f32 %v533, %v705
    %v707 = vpop.f32.mrb[0].mxu0
    %v708 = vpop.f32.mrb[0].mxu0
    %v709 = vadd.f32 %v536, %v708
    %v710 = vpop.f32.mrb[0].mxu0
    %711 = vmatprep.mubr.bf16.mxu0 0
    %712 = vmatmul.mubr.bf16.gmra.mrb[0].mxu0 %v651
    %v713 = vpop.f32.mrb[0].mxu0
    %v714 = vadd.f32 %v541, %v713
    %v715 = vpop.f32.mrb[0].mxu0
    %v716 = vpop.f32.mrb[0].mxu0
    %v717 = vadd.f32 %v544, %v716
    %v718 = vpop.f32.mrb[0].mxu0
    %719 = vmatprep.mubr.bf16.mxu0 0
    %720 = vmatmul.mubr.bf16.gmra.mrb[0].mxu0 %v654
    %v721 = vpop.f32.mrb[0].mxu0
    %v722 = vadd.f32 %v549, %v721
    %v723 = vpop.f32.mrb[0].mxu0
    %v724 = vpop.f32.mrb[0].mxu0
    %v725 = vadd.f32 %v552, %v724
    %v726 = vpop.f32.mrb[0].mxu0
    %727 = vmatprep.mubr.bf16.mxu0 0
    %728 = vmatmul.mubr.bf16.gmra.mrb[0].mxu0 %v657
    %v729 = vpop.f32.mrb[0].mxu0
    %v730 = vadd.f32 %v557, %v729
    %v731 = vpop.f32.mrb[0].mxu0
    %v732 = vpop.f32.mrb[0].mxu0
    %v733 = vadd.f32 %v560, %v732
    %v734 = vpop.f32.mrb[0].mxu0
    %735 = vmatprep.mubr.bf16.mxu0 0
    %736 = vmatmul.mubr.bf16.gmra.mrb[0].mxu0 %v660
    %v737 = vpop.f32.mrb[0].mxu0
    %v738 = vadd.f32 %v565, %v737
    %v739 = vpop.f32.mrb[0].mxu0
    %v740 = vpop.f32.mrb[0].mxu0
    %v741 = vadd.f32 %v568, %v740
    %v742 = vpop.f32.mrb[0].mxu0
    %743 = vmatprep.mubr.bf16.mxu0 0
    %744 = vmatmul.mubr.bf16.gmra.mrb[0].mxu0 %v663
    %v745 = vpop.f32.mrb[0].mxu0
    %v746 = vadd.f32 %v573, %v745
    %v747 = vpop.f32.mrb[0].mxu0
    %v748 = vpop.f32.mrb[0].mxu0
    %v749 = vadd.f32 %v576, %v748
    %v750 = vpop.f32.mrb[0].mxu0
    %751 = vmatprep.mubr.bf16.mxu0 0
    %752 = vmatmul.mubr.bf16.gmra.mrb[0].mxu0 %v666
    %v753 = vpop.f32.mrb[0].mxu0
    %v754 = vadd.f32 %v581, %v753
    %v755 = vpop.f32.mrb[0].mxu0
    %v756 = vpop.f32.mrb[0].mxu0
    %v757 = vadd.f32 %v584, %v756
    %v758 = vpop.f32.mrb[0].mxu0
    %759 = vmatprep.mubr.bf16.mxu0 0
    %760 = vmatmul.mubr.bf16.gmra.mrb[0].mxu0 %v669
    %v761 = vpop.f32.mrb[0].mxu0
    %v762 = vadd.f32 %v589, %v761
    %v763 = vpop.f32.mrb[0].mxu0
    %v764 = vpop.f32.mrb[0].mxu0
    %v765 = vadd.f32 %v592, %v764
    %v766 = vpop.f32.mrb[0].mxu0
    %767 = vdwg.mxu0
    %v768 = vld [vmem:[%s5] sm:$0x1]
    %v770 = vlaneseq
    %v771 = vshrl.u32 %v770, 7
    %v772 = vsub.s32 0, %v771
    %v773 = vrot.slane %v768, %v772
    %v775 = vadd.f32 %v706, %v773
    %v776 = vadd.f32 %v709, %v773
    %v777 = vadd.f32 %v714, %v773
    %v778 = vadd.f32 %v717, %v773
    %v779 = vadd.f32 %v722, %v773
    %v780 = vadd.f32 %v725, %v773
    %v781 = vadd.f32 %v730, %v773
    %v782 = vadd.f32 %v733, %v773
    %v783 = vadd.f32 %v738, %v773
    %v784 = vadd.f32 %v741, %v773
    %v785 = vadd.f32 %v746, %v773
    %v786 = vadd.f32 %v749, %v773
    %v787 = vadd.f32 %v754, %v773
    %v788 = vadd.f32 %v757, %v773
    %v789 = vadd.f32 %v762, %v773
    %v790 = vadd.f32 %v765, %v773
    %v791 = vmax.f32 %v775, 0.0
    %v792 = vmax.f32 %v776, 0.0
    %v793 = vmax.f32 %v777, 0.0
    %v794 = vmax.f32 %v778, 0.0
    %v795 = vmax.f32 %v779, 0.0
    %v796 = vmax.f32 %v780, 0.0
    %v797 = vmax.f32 %v781, 0.0
    %v798 = vmax.f32 %v782, 0.0
    %v799 = vmax.f32 %v783, 0.0
    %v800 = vmax.f32 %v784, 0.0
    %v801 = vmax.f32 %v785, 0.0
    %v802 = vmax.f32 %v786, 0.0
    %v803 = vmax.f32 %v787, 0.0
    %v804 = vmax.f32 %v788, 0.0
    %v805 = vmax.f32 %v789, 0.0
    %v806 = vmax.f32 %v790, 0.0
    %v807 = vpack.c.bf16 %v792, %v791
    %v808 = vpack.c.bf16 %v794, %v793
    %v809 = vpack.c.bf16 %v796, %v795
    %v810 = vpack.c.bf16 %v798, %v797
    %v811 = vpack.c.bf16 %v800, %v799
    %v812 = vpack.c.bf16 %v802, %v801
    %v813 = vpack.c.bf16 %v804, %v803
    %v814 = vpack.c.bf16 %v806, %v805
    %v823 = vunpack.c.l.b16 %v807
    %v824 = vunpack.c.h.b16 %v807
    %v825 = vunpack.c.l.b16 %v808
    %v826 = vunpack.c.h.b16 %v808
    %v827 = vunpack.c.l.b16 %v809
    %v828 = vunpack.c.h.b16 %v809
    %v829 = vunpack.c.l.b16 %v810
    %v830 = vunpack.c.h.b16 %v810
    %v831 = vunpack.c.l.b16 %v811
    %v832 = vunpack.c.h.b16 %v811
    %v833 = vunpack.c.l.b16 %v812
    %v834 = vunpack.c.h.b16 %v812
    %v835 = vunpack.c.l.b16 %v813
    %v836 = vunpack.c.h.b16 %v813
    %v837 = vunpack.c.l.b16 %v814
    %v838 = vunpack.c.h.b16 %v814
    %v839 = vpack.c.b16 %v823, %v823
    %v840 = vpack.c.b16 %v824, %v824
    %v841 = vpack.c.b16 %v825, %v825
    %v842 = vpack.c.b16 %v826, %v826
    %v843 = vpack.c.b16 %v827, %v827
    %v844 = vpack.c.b16 %v828, %v828
    %v845 = vpack.c.b16 %v829, %v829
    %v846 = vpack.c.b16 %v830, %v830
    %v847 = vpack.c.b16 %v831, %v831
    %v848 = vpack.c.b16 %v832, %v832
    %v849 = vpack.c.b16 %v833, %v833
    %v850 = vpack.c.b16 %v834, %v834
    %v851 = vpack.c.b16 %v835, %v835
    %v852 = vpack.c.b16 %v836, %v836
    %v853 = vpack.c.b16 %v837, %v837
    %v854 = vpack.c.b16 %v838, %v838
    %871 = vst [vmem:[%s6] sm:$0xf] %v839
    %872 = vst [vmem:[%s6 + $0x4] sm:$0xf] %v840
    %873 = vst [vmem:[%s6 + $0x8] sm:$0xf] %v841
    %874 = vst [vmem:[%s6 + $0xc] sm:$0xf] %v842
    %875 = vst [vmem:[%s6 + $0x10] sm:$0xf] %v843
    %876 = vst [vmem:[%s6 + $0x14] sm:$0xf] %v844
    %877 = vst [vmem:[%s6 + $0x18] sm:$0xf] %v845
    %878 = vst [vmem:[%s6 + $0x1c] sm:$0xf] %v846
    %879 = vst [vmem:[%s6 + $0x20] sm:$0xf] %v847
    %880 = vst [vmem:[%s6 + $0x24] sm:$0xf] %v848
    %881 = vst [vmem:[%s6 + $0x28] sm:$0xf] %v849
    %882 = vst [vmem:[%s6 + $0x2c] sm:$0xf] %v850
    %883 = vst [vmem:[%s6 + $0x30] sm:$0xf] %v851
    %884 = vst [vmem:[%s6 + $0x34] sm:$0xf] %v852
    %885 = vst [vmem:[%s6 + $0x38] sm:$0xf] %v853
    %886 = vst [vmem:[%s6 + $0x3c] sm:$0xf] %v854
  $region33: #{graphsage_forward.2} parent=0 // pred_fallthru
    _
  // Predicated region
  $region34: #{graphsage_forward.2} parent=0 // pred_check
    _
  $region35: #{graphsage_forward.2} parent=0 // pred_check_branch
    %888 = sbr.rel (0) target = $region37
  $region36: #{graphsage_forward.2} parent=0 // pred_region
    _
  $region37: #{graphsage_forward.2} parent=0 // pred_fallthru
    _
  // Predicated region
  $region38: #{graphsage_forward.2} parent=0 // pred_check
    _
  $region39: #{graphsage_forward.2} parent=0 // pred_check_branch
    %890 = sbr.rel (0) target = $region41
  $region40: #{graphsage_forward.2} parent=0 // pred_region
    _
  $region41: #{graphsage_forward.2} parent=0 // pred_fallthru
    _

</llo_original>
